<compile_context>
chip_gen: v7x
topology: tpu7x:2x2x1
jax: 0.10.0
libtpu: 0.0.40
codegen_flags: <defaults>
</compile_context>

<pallas_src>
import functools

import jax
import jax.numpy as jnp
from jax.experimental import pallas as pl
from jax.experimental.pallas import tpu as pltpu


EMBEDDING = 16     # encoder hidden size (== embedding, fixed by the module)
FAULT_TYPE = 6     # classifier output size
NF_PAD = 128       # lane-padded fused-head output width (>= 3 * FAULT_TYPE)


def _lstm_heads_kernel(Bp, T, H,
                       xf_ref, wih_ref, whh_ref, bg_ref, wall_ref, ball_ref,
                       out_ref, g_scr):
    """Fused LSTM encoder + fused classifier heads (single grid step).

    xf_ref  : (T*Bp, F)     time-major fused-batch input, row index = t*Bp + b
    wih_ref : (F, 4H)       W_ih^T, gate columns reordered to [i, f, o, g]
    whh_ref : (H, 4H)       W_hh^T, same gate order
    bg_ref  : (1, 4H)       b_ih + b_hh, same gate order
    wall_ref: (T*H, NF_PAD) fused head weights (cols [k*NF:(k+1)*NF] = head k)
    ball_ref: (1, NF_PAD)   fused head biases
    out_ref : (Bp, NF_PAD)  lane-dense output block
    g_scr   : (T*Bp, 4H)    hoisted gate pre-activations (VMEM scratch)
    """
    # (1) Hoisted input projection: ONE MXU matmul covering every branch and
    #     every time step (removes T-1 matmuls from the serial recurrence).
    g_scr[...] = (jnp.dot(xf_ref[...], wih_ref[...],
                          preferred_element_type=jnp.float32)
                  + bg_ref[...])

    whh = whh_ref[...]
    h = jnp.zeros((Bp, H), dtype=jnp.float32)
    c = jnp.zeros((Bp, H), dtype=jnp.float32)
    hs = []

    # (2) Serial LSTM recurrence, fully unrolled (T is small and static); only
    #     the h @ W_hh matmul remains on the serial chain.
    for t in range(T):
        # Contiguous, sublane-aligned block of per-step gate pre-activations
        # (time-major layout: rows t*Bp .. (t+1)*Bp, Bp is a multiple of 8).
        gx_t = g_scr[t * Bp:(t + 1) * Bp, :]
        gates = gx_t + jnp.dot(h, whh, preferred_element_type=jnp.float32)
        # Gate columns are pre-permuted to [i, f, o, g]: one contiguous sigmoid
        # over 3H lanes + one tanh over H lanes per step.
        sig = jax.nn.sigmoid(gates[:, 0:3 * H])
        i_g = sig[:, 0 * H:1 * H]
        f_g = sig[:, 1 * H:2 * H]
        o_g = sig[:, 2 * H:3 * H]
        g_g = jnp.tanh(gates[:, 3 * H:4 * H])
        c = f_g * c + i_g * g_g
        h = o_g * jnp.tanh(c)
        hs.append(h)                       # keep h in registers (no VMEM trip)

    # nn.Flatten() layout: feature index = t*H + h.  T*H == 128 here, so this
    # lane concat produces exactly one vreg lane width per batch row.
    flat = jnp.concatenate(hs, axis=1)     # (Bp, T*H)

    # (3) Fused classifier heads (f1/f2/f3 packed column-wise, lane-padded).
    #     Dropout(0.2) is identity at inference.  Single MXU matmul, lane-dense
    #     unmasked output store.
    out_ref[...] = (jnp.dot(flat, wall_ref[...],
                            preferred_element_type=jnp.float32)
                    + ball_ref[...])


def _fused_forward_pallas(packed, xf, Bp, T, F):
    """One pallas_call for the fused (padded) batch.  xf: (T*Bp, F) float32."""
    H = packed["whh_t"].shape[0]

    kernel = functools.partial(_lstm_heads_kernel, Bp, T, H)
    return pl.pallas_call(
        kernel,
        out_shape=jax.ShapeDtypeStruct((Bp, NF_PAD), jnp.float32),
        grid_spec=pltpu.PrefetchScalarGridSpec(
            num_scalar_prefetch=0,
            grid=(1,),                                       # fully VMEM resident
            in_specs=[
                pl.BlockSpec((T * Bp, F), lambda i: (0, 0)),       # x (time-major)
                pl.BlockSpec((F, 4 * H), lambda i: (0, 0)),        # W_ih^T [i,f,o,g]
                pl.BlockSpec((H, 4 * H), lambda i: (0, 0)),        # W_hh^T [i,f,o,g]
                pl.BlockSpec((1, 4 * H), lambda i: (0, 0)),        # b_ih + b_hh
                pl.BlockSpec((T * H, NF_PAD), lambda i: (0, 0)),   # fused head W
                pl.BlockSpec((1, NF_PAD), lambda i: (0, 0)),       # fused head b
            ],
            out_specs=pl.BlockSpec((Bp, NF_PAD), lambda i: (0, 0)),
            scratch_shapes=[
                pltpu.VMEM((T * Bp, 4 * H), jnp.float32),   # hoisted gate pre-acts
            ],
        ),
        compiler_params=pltpu.CompilerParams(
            dimension_semantics=("arbitrary",)),
    )(xf, packed["wih_t"], packed["whh_t"], packed["b_gates"],
      packed["head_w_all"], packed["head_b_all"])


def _reorder_gate_cols(m, H):
    """Permute PyTorch LSTM gate columns [i, f, g, o] -> [i, f, o, g]."""
    return jnp.concatenate(
        [m[..., 0:2 * H], m[..., 3 * H:4 * H], m[..., 2 * H:3 * H]], axis=-1)


def prepare_params(params):
    """Host-side, one-time packing of canonical params for the kernel.

    - gate columns reordered to [i, f, o, g] (contiguous sigmoid/tanh slices)
    - the three heads fused column-wise and lane-padded to NF_PAD
    """
    H = params["whh_t"].shape[0]
    NF = params["head_w"].shape[-1]
    w_cat = jnp.concatenate([params["head_w"][k] for k in range(3)], axis=1)
    b_cat = jnp.concatenate([params["head_b"][k] for k in range(3)], axis=1)
    pad = NF_PAD - 3 * NF
    return {
        "wih_t": _reorder_gate_cols(params["wih_t"], H),
        "whh_t": _reorder_gate_cols(params["whh_t"], H),
        "b_gates": _reorder_gate_cols(params["b_gates"], H),
        "head_w_all": jnp.pad(w_cat, ((0, 0), (0, pad))),
        "head_b_all": jnp.pad(b_cat, ((0, 0), (0, pad))),
    }


def batch_process_pretrained_model3_forward(params, xtrain1, xtrain2, xtrain3):
    """Mirrors the PyTorch forward: shared encoder + f1/f2/f3 heads.

    Branches with an empty batch return None (Python-time static check, as in
    the original module).  Non-empty branches are fused into one kernel call.
    """
    NF = FAULT_TYPE
    xs = (xtrain1, xtrain2, xtrain3)
    active = [k for k in range(3) if xs[k].shape[0] > 0]
    outs = [None, None, None]
    if not active:
        return tuple(outs)

    T, F = xs[active[0]].shape[1], xs[active[0]].shape[2]
    for k in active:
        assert xs[k].shape[1:] == (T, F), "branches must share (T, F) to fuse"

    sizes = [xs[k].shape[0] for k in active]
    Bt = sum(sizes)
    Bp = ((Bt + 7) // 8) * 8                    # pad fused batch to 8 sublanes
    x_cat = jnp.concatenate([xs[k] for k in active], axis=0)      # (Bt, T, F)
    if Bp > Bt:
        x_cat = jnp.concatenate(
            [x_cat, jnp.zeros((Bp - Bt, T, F), x_cat.dtype)], axis=0)
    # Time-major layout: row index = t*Bp + b (contiguous per-step reads).
    xf = x_cat.transpose(1, 0, 2).reshape(T * Bp, F)

    packed = prepare_params(params)
    out = _fused_forward_pallas(packed, xf, Bp, T, F)   # (Bp, NF_PAD)

    lo = 0
    for sz, k in zip(sizes, active):
        outs[k] = out[lo:lo + sz, k * NF:(k + 1) * NF]
        lo += sz
    return tuple(outs)


def init_params(feat_dim, seq_len, key=jax.random.PRNGKey(42)):
    """Deterministic synthetic parameters, canonical PyTorch layout/order."""
    H, NF = EMBEDDING, FAULT_TYPE
    in_head = seq_len * H
    ks = jax.random.split(key, 6)
    k_enc = 1.0 / jnp.sqrt(jnp.float32(H))
    k_head = 1.0 / jnp.sqrt(jnp.float32(in_head))

    def u(kk, shape, lim):
        return jax.random.uniform(kk, shape, jnp.float32, -lim, lim)

    return {
        # assumed-LSTM encoder, stored pre-transposed for x @ W, gates [i,f,g,o]
        "wih_t": u(ks[0], (feat_dim, 4 * H), k_enc),
        "whh_t": u(ks[1], (H, 4 * H), k_enc),
        "b_gates": u(ks[2], (1, 4 * H), k_enc) + u(ks[3], (1, 4 * H), k_enc),
        # f1/f2/f3 heads: Linear(T*H, 6) each, stacked and pre-transposed
        "head_w": u(ks[4], (3, in_head, NF), k_head),
        "head_b": u(ks[5], (3, 1, NF), k_head),
    }


def _forward_reference(params, xs):
    """Pure-JAX reference of the same forward (for the correctness check)."""
    H = params["whh_t"].shape[0]
    outs = []
    for k, x in enumerate(xs):
        if x.shape[0] == 0:
            outs.append(None)
            continue
        B, T, _ = x.shape
        h = jnp.zeros((B, H), jnp.float32)
        c = jnp.zeros((B, H), jnp.float32)
        hs = []
        for t in range(T):
            g = (x[:, t, :] @ params["wih_t"] + h @ params["whh_t"]
                 + params["b_gates"])
            i = jax.nn.sigmoid(g[:, :H])
            f = jax.nn.sigmoid(g[:, H:2 * H])
            gg = jnp.tanh(g[:, 2 * H:3 * H])
            o = jax.nn.sigmoid(g[:, 3 * H:])
            c = f * c + i * gg
            h = o * jnp.tanh(c)
            hs.append(h)
        flat = jnp.concatenate(hs, axis=1)           # nn.Flatten order t*H + h
        outs.append(flat @ params["head_w"][k] + params["head_b"][k])
    return outs


if __name__ == "__main__":
    B, T, F = 2, 8, 32   # small shapes: per-branch batch=2, seq=8, feature=32
    key = jax.random.PRNGKey(0)
    k1, k2, k3 = jax.random.split(key, 3)
    x1 = jax.random.normal(k1, (B, T, F), jnp.float32)
    x2 = jax.random.normal(k2, (B, T, F), jnp.float32)
    x3 = jax.random.normal(k3, (B, T, F), jnp.float32)

    params = init_params(F, T)

    f1, f2, f3 = batch_process_pretrained_model3_forward(params, x1, x2, x3)
    jax.block_until_ready((f1, f2, f3))

    assert f1.shape == (B, FAULT_TYPE)
    assert f2.shape == (B, FAULT_TYPE)
    assert f3.shape == (B, FAULT_TYPE)

    # Numerical check against a pure-JAX reference of the same forward.
    r1, r2, r3 = _forward_reference(params, [x1, x2, x3])
    for got, want in ((f1, r1), (f2, r2), (f3, r3)):
        err = float(jnp.max(jnp.abs(got - want)))
        assert err < 1e-2, f"mismatch vs reference: max abs err = {err}"

    print("KERNEL_OK")
</pallas_src>

<mosaic_0001>
module attributes {stable_mosaic.version = 11 : i64} {
  func.func @_lstm_heads_kernel(%arg0: i32, %arg1: memref<64x32xf32, #tpu.memory_space<vmem>>, %arg2: memref<32x64xf32, #tpu.memory_space<vmem>>, %arg3: memref<16x64xf32, #tpu.memory_space<vmem>>, %arg4: memref<1x64xf32, #tpu.memory_space<vmem>>, %arg5: memref<128x128xf32, #tpu.memory_space<vmem>>, %arg6: memref<1x128xf32, #tpu.memory_space<vmem>>, %arg7: memref<8x128xf32, #tpu.memory_space<vmem>>, %arg8: memref<64x64xf32, #tpu.memory_space<vmem>>) attributes {dimension_semantics = [#tpu.dimension_semantics<arbitrary>], iteration_bounds = array<i64: 1>, scalar_prefetch = 0 : i64, scratch_operands = 1 : i64, tpu.core_type = #tpu.core_type<tc>, window_params = [{pipeline_mode = #tpu.pipeline_mode<synchronous>, transform_indices = @transform_0, window_bounds = array<i64: 64, 32>}, {pipeline_mode = #tpu.pipeline_mode<synchronous>, transform_indices = @transform_1, window_bounds = array<i64: 32, 64>}, {pipeline_mode = #tpu.pipeline_mode<synchronous>, transform_indices = @transform_2, window_bounds = array<i64: 16, 64>}, {pipeline_mode = #tpu.pipeline_mode<synchronous>, transform_indices = @transform_3, window_bounds = array<i64: 1, 64>}, {pipeline_mode = #tpu.pipeline_mode<synchronous>, transform_indices = @transform_4, window_bounds = array<i64: 128, 128>}, {pipeline_mode = #tpu.pipeline_mode<synchronous>, transform_indices = @transform_5, window_bounds = array<i64: 1, 128>}, {pipeline_mode = #tpu.pipeline_mode<synchronous>, transform_indices = @transform_6, window_bounds = array<i64: 8, 128>}]} {
    %c0 = arith.constant 0 : index
    %c0_0 = arith.constant 0 : index
    %0 = vector.load %arg1[%c0, %c0_0] : memref<64x32xf32, #tpu.memory_space<vmem>>, vector<64x32xf32>
    %c0_1 = arith.constant 0 : index
    %c0_2 = arith.constant 0 : index
    %1 = vector.load %arg2[%c0_1, %c0_2] : memref<32x64xf32, #tpu.memory_space<vmem>>, vector<32x64xf32>
    %cst = arith.constant dense<0.000000e+00> : vector<64x64xf32>
    %2 = tpu.matmul %0, %1, %cst {dimension_numbers = #tpu.dot_dimension_numbers<[1], [0], [0], [1], [0, 0, 1, 1], [], []>} : vector<64x32xf32>, vector<32x64xf32>, vector<64x64xf32> -> vector<64x64xf32>
    %c0_3 = arith.constant 0 : index
    %c0_4 = arith.constant 0 : index
    %3 = vector.load %arg4[%c0_3, %c0_4] : memref<1x64xf32, #tpu.memory_space<vmem>>, vector<1x64xf32>
    %4 = vector.broadcast %3 : vector<1x64xf32> to vector<64x64xf32>
    %5 = arith.addf %2, %4 : vector<64x64xf32>
    %c0_5 = arith.constant 0 : index
    %c0_6 = arith.constant 0 : index
    %6 = vector.load %arg8[%c0_5, %c0_6] : memref<64x64xf32, #tpu.memory_space<vmem>>, vector<64x64xf32>
    tpu.vector_store %arg8[%c0_5, %c0_6], %5 {strides = array<i32>} : memref<64x64xf32, #tpu.memory_space<vmem>>, vector<64x64xf32>,
    %c0_7 = arith.constant 0 : index
    %c0_8 = arith.constant 0 : index
    %7 = vector.load %arg3[%c0_7, %c0_8] : memref<16x64xf32, #tpu.memory_space<vmem>>, vector<16x64xf32>
    %cst_9 = arith.constant 0.000000e+00 : f32
    %8 = vector.broadcast %cst_9 : f32 to vector<8x16xf32>
    %cst_10 = arith.constant 0.000000e+00 : f32
    %9 = vector.broadcast %cst_10 : f32 to vector<8x16xf32>
    %c0_11 = arith.constant 0 : index
    %c0_12 = arith.constant 0 : index
    %10 = vector.load %arg8[%c0_11, %c0_12] : memref<64x64xf32, #tpu.memory_space<vmem>>, vector<8x64xf32>
    %cst_13 = arith.constant dense<0.000000e+00> : vector<8x64xf32>
    %11 = tpu.matmul %8, %7, %cst_13 {dimension_numbers = #tpu.dot_dimension_numbers<[1], [0], [0], [1], [0, 0, 1, 1], [], []>} : vector<8x16xf32>, vector<16x64xf32>, vector<8x64xf32> -> vector<8x64xf32>
    %12 = arith.addf %10, %11 : vector<8x64xf32>
    %13 = vector.extract_strided_slice %12 {offsets = [0, 0], sizes = [8, 48], strides = [1, 1]} : vector<8x64xf32> to vector<8x48xf32>
    %14 = arith.negf %13 : vector<8x48xf32>
    %15 = math.exp %14 : vector<8x48xf32>
    %cst_14 = arith.constant 1.000000e+00 : f32
    %16 = vector.broadcast %cst_14 : f32 to vector<8x48xf32>
    %17 = arith.addf %16, %15 : vector<8x48xf32>
    %18 = arith.divf %16, %17 : vector<8x48xf32>
    %19 = vector.extract_strided_slice %18 {offsets = [0, 0], sizes = [8, 16], strides = [1, 1]} : vector<8x48xf32> to vector<8x16xf32>
    %20 = vector.extract_strided_slice %18 {offsets = [0, 16], sizes = [8, 16], strides = [1, 1]} : vector<8x48xf32> to vector<8x16xf32>
    %21 = vector.extract_strided_slice %18 {offsets = [0, 32], sizes = [8, 16], strides = [1, 1]} : vector<8x48xf32> to vector<8x16xf32>
    %22 = vector.extract_strided_slice %12 {offsets = [0, 48], sizes = [8, 16], strides = [1, 1]} : vector<8x64xf32> to vector<8x16xf32>
    %23 = math.tanh %22 : vector<8x16xf32>
    %24 = arith.mulf %20, %9 : vector<8x16xf32>
    %25 = arith.mulf %19, %23 : vector<8x16xf32>
    %26 = arith.addf %24, %25 : vector<8x16xf32>
    %27 = math.tanh %26 : vector<8x16xf32>
    %28 = arith.mulf %21, %27 : vector<8x16xf32>
    %c8 = arith.constant 8 : index
    %c0_15 = arith.constant 0 : index
    %29 = vector.load %arg8[%c8, %c0_15] : memref<64x64xf32, #tpu.memory_space<vmem>>, vector<8x64xf32>
    %cst_16 = arith.constant dense<0.000000e+00> : vector<8x64xf32>
    %30 = tpu.matmul %28, %7, %cst_16 {dimension_numbers = #tpu.dot_dimension_numbers<[1], [0], [0], [1], [0, 0, 1, 1], [], []>} : vector<8x16xf32>, vector<16x64xf32>, vector<8x64xf32> -> vector<8x64xf32>
    %31 = arith.addf %29, %30 : vector<8x64xf32>
    %32 = vector.extract_strided_slice %31 {offsets = [0, 0], sizes = [8, 48], strides = [1, 1]} : vector<8x64xf32> to vector<8x48xf32>
    %33 = arith.negf %32 : vector<8x48xf32>
    %34 = math.exp %33 : vector<8x48xf32>
    %cst_17 = arith.constant 1.000000e+00 : f32
    %35 = vector.broadcast %cst_17 : f32 to vector<8x48xf32>
    %36 = arith.addf %35, %34 : vector<8x48xf32>
    %37 = arith.divf %35, %36 : vector<8x48xf32>
    %38 = vector.extract_strided_slice %37 {offsets = [0, 0], sizes = [8, 16], strides = [1, 1]} : vector<8x48xf32> to vector<8x16xf32>
    %39 = vector.extract_strided_slice %37 {offsets = [0, 16], sizes = [8, 16], strides = [1, 1]} : vector<8x48xf32> to vector<8x16xf32>
    %40 = vector.extract_strided_slice %37 {offsets = [0, 32], sizes = [8, 16], strides = [1, 1]} : vector<8x48xf32> to vector<8x16xf32>
    %41 = vector.extract_strided_slice %31 {offsets = [0, 48], sizes = [8, 16], strides = [1, 1]} : vector<8x64xf32> to vector<8x16xf32>
    %42 = math.tanh %41 : vector<8x16xf32>
    %43 = arith.mulf %39, %26 : vector<8x16xf32>
    %44 = arith.mulf %38, %42 : vector<8x16xf32>
    %45 = arith.addf %43, %44 : vector<8x16xf32>
    %46 = math.tanh %45 : vector<8x16xf32>
    %47 = arith.mulf %40, %46 : vector<8x16xf32>
    %c16 = arith.constant 16 : index
    %c0_18 = arith.constant 0 : index
    %48 = vector.load %arg8[%c16, %c0_18] : memref<64x64xf32, #tpu.memory_space<vmem>>, vector<8x64xf32>
    %cst_19 = arith.constant dense<0.000000e+00> : vector<8x64xf32>
    %49 = tpu.matmul %47, %7, %cst_19 {dimension_numbers = #tpu.dot_dimension_numbers<[1], [0], [0], [1], [0, 0, 1, 1], [], []>} : vector<8x16xf32>, vector<16x64xf32>, vector<8x64xf32> -> vector<8x64xf32>
    %50 = arith.addf %48, %49 : vector<8x64xf32>
    %51 = vector.extract_strided_slice %50 {offsets = [0, 0], sizes = [8, 48], strides = [1, 1]} : vector<8x64xf32> to vector<8x48xf32>
    %52 = arith.negf %51 : vector<8x48xf32>
    %53 = math.exp %52 : vector<8x48xf32>
    %cst_20 = arith.constant 1.000000e+00 : f32
    %54 = vector.broadcast %cst_20 : f32 to vector<8x48xf32>
    %55 = arith.addf %54, %53 : vector<8x48xf32>
    %56 = arith.divf %54, %55 : vector<8x48xf32>
    %57 = vector.extract_strided_slice %56 {offsets = [0, 0], sizes = [8, 16], strides = [1, 1]} : vector<8x48xf32> to vector<8x16xf32>
    %58 = vector.extract_strided_slice %56 {offsets = [0, 16], sizes = [8, 16], strides = [1, 1]} : vector<8x48xf32> to vector<8x16xf32>
    %59 = vector.extract_strided_slice %56 {offsets = [0, 32], sizes = [8, 16], strides = [1, 1]} : vector<8x48xf32> to vector<8x16xf32>
    %60 = vector.extract_strided_slice %50 {offsets = [0, 48], sizes = [8, 16], strides = [1, 1]} : vector<8x64xf32> to vector<8x16xf32>
    %61 = math.tanh %60 : vector<8x16xf32>
    %62 = arith.mulf %58, %45 : vector<8x16xf32>
    %63 = arith.mulf %57, %61 : vector<8x16xf32>
    %64 = arith.addf %62, %63 : vector<8x16xf32>
    %65 = math.tanh %64 : vector<8x16xf32>
    %66 = arith.mulf %59, %65 : vector<8x16xf32>
    %c24 = arith.constant 24 : index
    %c0_21 = arith.constant 0 : index
    %67 = vector.load %arg8[%c24, %c0_21] : memref<64x64xf32, #tpu.memory_space<vmem>>, vector<8x64xf32>
    %cst_22 = arith.constant dense<0.000000e+00> : vector<8x64xf32>
    %68 = tpu.matmul %66, %7, %cst_22 {dimension_numbers = #tpu.dot_dimension_numbers<[1], [0], [0], [1], [0, 0, 1, 1], [], []>} : vector<8x16xf32>, vector<16x64xf32>, vector<8x64xf32> -> vector<8x64xf32>
    %69 = arith.addf %67, %68 : vector<8x64xf32>
    %70 = vector.extract_strided_slice %69 {offsets = [0, 0], sizes = [8, 48], strides = [1, 1]} : vector<8x64xf32> to vector<8x48xf32>
    %71 = arith.negf %70 : vector<8x48xf32>
    %72 = math.exp %71 : vector<8x48xf32>
    %cst_23 = arith.constant 1.000000e+00 : f32
    %73 = vector.broadcast %cst_23 : f32 to vector<8x48xf32>
    %74 = arith.addf %73, %72 : vector<8x48xf32>
    %75 = arith.divf %73, %74 : vector<8x48xf32>
    %76 = vector.extract_strided_slice %75 {offsets = [0, 0], sizes = [8, 16], strides = [1, 1]} : vector<8x48xf32> to vector<8x16xf32>
    %77 = vector.extract_strided_slice %75 {offsets = [0, 16], sizes = [8, 16], strides = [1, 1]} : vector<8x48xf32> to vector<8x16xf32>
    %78 = vector.extract_strided_slice %75 {offsets = [0, 32], sizes = [8, 16], strides = [1, 1]} : vector<8x48xf32> to vector<8x16xf32>
    %79 = vector.extract_strided_slice %69 {offsets = [0, 48], sizes = [8, 16], strides = [1, 1]} : vector<8x64xf32> to vector<8x16xf32>
    %80 = math.tanh %79 : vector<8x16xf32>
    %81 = arith.mulf %77, %64 : vector<8x16xf32>
    %82 = arith.mulf %76, %80 : vector<8x16xf32>
    %83 = arith.addf %81, %82 : vector<8x16xf32>
    %84 = math.tanh %83 : vector<8x16xf32>
    %85 = arith.mulf %78, %84 : vector<8x16xf32>
    %c32 = arith.constant 32 : index
    %c0_24 = arith.constant 0 : index
    %86 = vector.load %arg8[%c32, %c0_24] : memref<64x64xf32, #tpu.memory_space<vmem>>, vector<8x64xf32>
    %cst_25 = arith.constant dense<0.000000e+00> : vector<8x64xf32>
    %87 = tpu.matmul %85, %7, %cst_25 {dimension_numbers = #tpu.dot_dimension_numbers<[1], [0], [0], [1], [0, 0, 1, 1], [], []>} : vector<8x16xf32>, vector<16x64xf32>, vector<8x64xf32> -> vector<8x64xf32>
    %88 = arith.addf %86, %87 : vector<8x64xf32>
    %89 = vector.extract_strided_slice %88 {offsets = [0, 0], sizes = [8, 48], strides = [1, 1]} : vector<8x64xf32> to vector<8x48xf32>
    %90 = arith.negf %89 : vector<8x48xf32>
    %91 = math.exp %90 : vector<8x48xf32>
    %cst_26 = arith.constant 1.000000e+00 : f32
    %92 = vector.broadcast %cst_26 : f32 to vector<8x48xf32>
    %93 = arith.addf %92, %91 : vector<8x48xf32>
    %94 = arith.divf %92, %93 : vector<8x48xf32>
    %95 = vector.extract_strided_slice %94 {offsets = [0, 0], sizes = [8, 16], strides = [1, 1]} : vector<8x48xf32> to vector<8x16xf32>
    %96 = vector.extract_strided_slice %94 {offsets = [0, 16], sizes = [8, 16], strides = [1, 1]} : vector<8x48xf32> to vector<8x16xf32>
    %97 = vector.extract_strided_slice %94 {offsets = [0, 32], sizes = [8, 16], strides = [1, 1]} : vector<8x48xf32> to vector<8x16xf32>
    %98 = vector.extract_strided_slice %88 {offsets = [0, 48], sizes = [8, 16], strides = [1, 1]} : vector<8x64xf32> to vector<8x16xf32>
    %99 = math.tanh %98 : vector<8x16xf32>
    %100 = arith.mulf %96, %83 : vector<8x16xf32>
    %101 = arith.mulf %95, %99 : vector<8x16xf32>
    %102 = arith.addf %100, %101 : vector<8x16xf32>
    %103 = math.tanh %102 : vector<8x16xf32>
    %104 = arith.mulf %97, %103 : vector<8x16xf32>
    %c40 = arith.constant 40 : index
    %c0_27 = arith.constant 0 : index
    %105 = vector.load %arg8[%c40, %c0_27] : memref<64x64xf32, #tpu.memory_space<vmem>>, vector<8x64xf32>
    %cst_28 = arith.constant dense<0.000000e+00> : vector<8x64xf32>
    %106 = tpu.matmul %104, %7, %cst_28 {dimension_numbers = #tpu.dot_dimension_numbers<[1], [0], [0], [1], [0, 0, 1, 1], [], []>} : vector<8x16xf32>, vector<16x64xf32>, vector<8x64xf32> -> vector<8x64xf32>
    %107 = arith.addf %105, %106 : vector<8x64xf32>
    %108 = vector.extract_strided_slice %107 {offsets = [0, 0], sizes = [8, 48], strides = [1, 1]} : vector<8x64xf32> to vector<8x48xf32>
    %109 = arith.negf %108 : vector<8x48xf32>
    %110 = math.exp %109 : vector<8x48xf32>
    %cst_29 = arith.constant 1.000000e+00 : f32
    %111 = vector.broadcast %cst_29 : f32 to vector<8x48xf32>
    %112 = arith.addf %111, %110 : vector<8x48xf32>
    %113 = arith.divf %111, %112 : vector<8x48xf32>
    %114 = vector.extract_strided_slice %113 {offsets = [0, 0], sizes = [8, 16], strides = [1, 1]} : vector<8x48xf32> to vector<8x16xf32>
    %115 = vector.extract_strided_slice %113 {offsets = [0, 16], sizes = [8, 16], strides = [1, 1]} : vector<8x48xf32> to vector<8x16xf32>
    %116 = vector.extract_strided_slice %113 {offsets = [0, 32], sizes = [8, 16], strides = [1, 1]} : vector<8x48xf32> to vector<8x16xf32>
    %117 = vector.extract_strided_slice %107 {offsets = [0, 48], sizes = [8, 16], strides = [1, 1]} : vector<8x64xf32> to vector<8x16xf32>
    %118 = math.tanh %117 : vector<8x16xf32>
    %119 = arith.mulf %115, %102 : vector<8x16xf32>
    %120 = arith.mulf %114, %118 : vector<8x16xf32>
    %121 = arith.addf %119, %120 : vector<8x16xf32>
    %122 = math.tanh %121 : vector<8x16xf32>
    %123 = arith.mulf %116, %122 : vector<8x16xf32>
    %c48 = arith.constant 48 : index
    %c0_30 = arith.constant 0 : index
    %124 = vector.load %arg8[%c48, %c0_30] : memref<64x64xf32, #tpu.memory_space<vmem>>, vector<8x64xf32>
    %cst_31 = arith.constant dense<0.000000e+00> : vector<8x64xf32>
    %125 = tpu.matmul %123, %7, %cst_31 {dimension_numbers = #tpu.dot_dimension_numbers<[1], [0], [0], [1], [0, 0, 1, 1], [], []>} : vector<8x16xf32>, vector<16x64xf32>, vector<8x64xf32> -> vector<8x64xf32>
    %126 = arith.addf %124, %125 : vector<8x64xf32>
    %127 = vector.extract_strided_slice %126 {offsets = [0, 0], sizes = [8, 48], strides = [1, 1]} : vector<8x64xf32> to vector<8x48xf32>
    %128 = arith.negf %127 : vector<8x48xf32>
    %129 = math.exp %128 : vector<8x48xf32>
    %cst_32 = arith.constant 1.000000e+00 : f32
    %130 = vector.broadcast %cst_32 : f32 to vector<8x48xf32>
    %131 = arith.addf %130, %129 : vector<8x48xf32>
    %132 = arith.divf %130, %131 : vector<8x48xf32>
    %133 = vector.extract_strided_slice %132 {offsets = [0, 0], sizes = [8, 16], strides = [1, 1]} : vector<8x48xf32> to vector<8x16xf32>
    %134 = vector.extract_strided_slice %132 {offsets = [0, 16], sizes = [8, 16], strides = [1, 1]} : vector<8x48xf32> to vector<8x16xf32>
    %135 = vector.extract_strided_slice %132 {offsets = [0, 32], sizes = [8, 16], strides = [1, 1]} : vector<8x48xf32> to vector<8x16xf32>
    %136 = vector.extract_strided_slice %126 {offsets = [0, 48], sizes = [8, 16], strides = [1, 1]} : vector<8x64xf32> to vector<8x16xf32>
    %137 = math.tanh %136 : vector<8x16xf32>
    %138 = arith.mulf %134, %121 : vector<8x16xf32>
    %139 = arith.mulf %133, %137 : vector<8x16xf32>
    %140 = arith.addf %138, %139 : vector<8x16xf32>
    %141 = math.tanh %140 : vector<8x16xf32>
    %142 = arith.mulf %135, %141 : vector<8x16xf32>
    %c56 = arith.constant 56 : index
    %c0_33 = arith.constant 0 : index
    %143 = vector.load %arg8[%c56, %c0_33] : memref<64x64xf32, #tpu.memory_space<vmem>>, vector<8x64xf32>
    %cst_34 = arith.constant dense<0.000000e+00> : vector<8x64xf32>
    %144 = tpu.matmul %142, %7, %cst_34 {dimension_numbers = #tpu.dot_dimension_numbers<[1], [0], [0], [1], [0, 0, 1, 1], [], []>} : vector<8x16xf32>, vector<16x64xf32>, vector<8x64xf32> -> vector<8x64xf32>
    %145 = arith.addf %143, %144 : vector<8x64xf32>
    %146 = vector.extract_strided_slice %145 {offsets = [0, 0], sizes = [8, 48], strides = [1, 1]} : vector<8x64xf32> to vector<8x48xf32>
    %147 = arith.negf %146 : vector<8x48xf32>
    %148 = math.exp %147 : vector<8x48xf32>
    %cst_35 = arith.constant 1.000000e+00 : f32
    %149 = vector.broadcast %cst_35 : f32 to vector<8x48xf32>
    %150 = arith.addf %149, %148 : vector<8x48xf32>
    %151 = arith.divf %149, %150 : vector<8x48xf32>
    %152 = vector.extract_strided_slice %151 {offsets = [0, 0], sizes = [8, 16], strides = [1, 1]} : vector<8x48xf32> to vector<8x16xf32>
    %153 = vector.extract_strided_slice %151 {offsets = [0, 16], sizes = [8, 16], strides = [1, 1]} : vector<8x48xf32> to vector<8x16xf32>
    %154 = vector.extract_strided_slice %151 {offsets = [0, 32], sizes = [8, 16], strides = [1, 1]} : vector<8x48xf32> to vector<8x16xf32>
    %155 = vector.extract_strided_slice %145 {offsets = [0, 48], sizes = [8, 16], strides = [1, 1]} : vector<8x64xf32> to vector<8x16xf32>
    %156 = math.tanh %155 : vector<8x16xf32>
    %157 = arith.mulf %153, %140 : vector<8x16xf32>
    %158 = arith.mulf %152, %156 : vector<8x16xf32>
    %159 = arith.addf %157, %158 : vector<8x16xf32>
    %160 = math.tanh %159 : vector<8x16xf32>
    %161 = arith.mulf %154, %160 : vector<8x16xf32>
    %162 = tpu.concatenate %28, %47, %66, %85, %104, %123, %142, %161 in 1 : vector<8x16xf32>, vector<8x16xf32>, vector<8x16xf32>, vector<8x16xf32>, vector<8x16xf32>, vector<8x16xf32>, vector<8x16xf32>, vector<8x16xf32> -> vector<8x128xf32>
    %c0_36 = arith.constant 0 : index
    %c0_37 = arith.constant 0 : index
    %163 = vector.load %arg5[%c0_36, %c0_37] : memref<128x128xf32, #tpu.memory_space<vmem>>, vector<128x128xf32>
    %cst_38 = arith.constant dense<0.000000e+00> : vector<8x128xf32>
    %164 = tpu.matmul %162, %163, %cst_38 {dimension_numbers = #tpu.dot_dimension_numbers<[1], [0], [0], [1], [0, 0, 1, 1], [], []>} : vector<8x128xf32>, vector<128x128xf32>, vector<8x128xf32> -> vector<8x128xf32>
    %c0_39 = arith.constant 0 : index
    %c0_40 = arith.constant 0 : index
    %165 = vector.load %arg6[%c0_39, %c0_40] : memref<1x128xf32, #tpu.memory_space<vmem>>, vector<1x128xf32>
    %166 = vector.broadcast %165 : vector<1x128xf32> to vector<8x128xf32>
    %167 = arith.addf %164, %166 : vector<8x128xf32>
    %c0_41 = arith.constant 0 : index
    %c0_42 = arith.constant 0 : index
    %168 = vector.load %arg7[%c0_41, %c0_42] : memref<8x128xf32, #tpu.memory_space<vmem>>, vector<8x128xf32>
    tpu.vector_store %arg7[%c0_41, %c0_42], %167 {strides = array<i32>} : memref<8x128xf32, #tpu.memory_space<vmem>>, vector<8x128xf32>,
    return
  }
  func.func @transform_0(%arg0: i32) -> (i32, i32) {
    %c0_i32 = arith.constant 0 : i32
    %c0_i32_0 = arith.constant 0 : i32
    %c0_i32_1 = arith.constant 0 : i32
    return %c0_i32, %c0_i32_0 : i32, i32
  }
  func.func @transform_1(%arg0: i32) -> (i32, i32) {
    %c0_i32 = arith.constant 0 : i32
    %c0_i32_0 = arith.constant 0 : i32
    %c0_i32_1 = arith.constant 0 : i32
    return %c0_i32, %c0_i32_0 : i32, i32
  }
  func.func @transform_2(%arg0: i32) -> (i32, i32) {
    %c0_i32 = arith.constant 0 : i32
    %c0_i32_0 = arith.constant 0 : i32
    %c0_i32_1 = arith.constant 0 : i32
    return %c0_i32, %c0_i32_0 : i32, i32
  }
  func.func @transform_3(%arg0: i32) -> (i32, i32) {
    %c0_i32 = arith.constant 0 : i32
    %c0_i32_0 = arith.constant 0 : i32
    %c0_i32_1 = arith.constant 0 : i32
    return %c0_i32, %c0_i32_0 : i32, i32
  }
  func.func @transform_4(%arg0: i32) -> (i32, i32) {
    %c0_i32 = arith.constant 0 : i32
    %c0_i32_0 = arith.constant 0 : i32
    %c0_i32_1 = arith.constant 0 : i32
    return %c0_i32, %c0_i32_0 : i32, i32
  }
  func.func @transform_5(%arg0: i32) -> (i32, i32) {
    %c0_i32 = arith.constant 0 : i32
    %c0_i32_0 = arith.constant 0 : i32
    %c0_i32_1 = arith.constant 0 : i32
    return %c0_i32, %c0_i32_0 : i32, i32
  }
  func.func @transform_6(%arg0: i32) -> (i32, i32) {
    %c0_i32 = arith.constant 0 : i32
    %c0_i32_0 = arith.constant 0 : i32
    %c0_i32_1 = arith.constant 0 : i32
    return %c0_i32, %c0_i32_0 : i32, i32
  }
}

</mosaic_0001>

<llo_original>
// kernel: tpu_custom_call.1
$region0: #{tpu_custom_call.1}
  #allocation0 [shape = 'u32[]', space=smem, size = 0x4, offset = 0x4, fixed_abs, tag = 'smem constant byte address 0x4 - core index']
  #allocation1 [shape = 'u32[144,128]{1,0:T(1,128)}', space=vmem, size = 0x12000, scoped, tag = 'internal scratch']
  #allocation2 [shape = 'f32[64,64]{1,0:T(8,128)}', space=vmem, size = 0x8000, scoped, tag = 'scratch operand']
  %s0 = inlined_call_operand.vmem [shape: f32[64,32], index: 0, kind: input, shape index: {}]
  %s1 = inlined_call_operand.vmem [shape: f32[32,64], index: 1, kind: input, shape index: {}]
  %s2 = inlined_call_operand.vmem [shape: f32[16,64], index: 2, kind: input, shape index: {}]
  %s3 = inlined_call_operand.vmem [shape: f32[1,64], index: 3, kind: input, shape index: {}]
  %s4 = inlined_call_operand.hbm [shape: f32[128,128], index: 4, kind: input, shape index: {}]
  %s5 = inlined_call_operand.vmem [shape: f32[1,128], index: 5, kind: input, shape index: {}]
  %s6 = inlined_call_operand.hbm [shape: f32[8,128], index: 6, kind: output, shape index: {}]
  %s7 = sld [smem:[#allocation0]]
  $region38: #{tpu_custom_call.1} parent=0
    _
  %s9 = ssub.s32 1, %s7
  %s10 = scalar_select 0, %s9, %s7
  $region1: #{tpu_custom_call.1} parent=0
    #allocation3 [shape = 'u8[65536]{0}', space=vmem, size = 0x10000, scoped, tag = 'input window, operand 4, single buffered']
    #allocation4 [shape = 's32[1]{0}', space=sflag, size = 0x4, scoped, tag = 'scoped memory for tpu_custom_call.1']
    #allocation5 [shape = 's32[1]{0}', space=sflag, size = 0x4, scoped, tag = 'scoped memory for tpu_custom_call.1']
    #allocation6 [shape = 'u8[4096]{0}', space=vmem, size = 0x1000, scoped, tag = 'output window, operand 0, single buffered']
    %11 = vsyncpa [#allocation4], 0
    %12 = vsyncpa [#allocation5], 0
    // Predicated region
    $region2: #{tpu_custom_call.1} parent=1 // pred_check
      _
    $region3: #{tpu_custom_call.1} parent=1 // pred_check_branch
      %14 = sbr.rel (0) target = $region5
    $region4: #{tpu_custom_call.1} parent=1 // pred_region
      _
    $region5: #{tpu_custom_call.1} parent=1 // pred_fallthru
      _
    // Predicated region
    $region6: #{tpu_custom_call.1} parent=1 // pred_check
      _
    $region7: #{tpu_custom_call.1} parent=1 // pred_check_branch
      %16 = sbr.rel (0) target = $region9
    $region8: #{tpu_custom_call.1} parent=1 // pred_region
      _
    $region9: #{tpu_custom_call.1} parent=1 // pred_fallthru
      _
    // Predicated region
    $region10: #{tpu_custom_call.1} parent=1 // pred_check
      _
    $region11: #{tpu_custom_call.1} parent=1 // pred_check_branch
      %18 = sbr.rel (0) target = $region13
    $region12: #{tpu_custom_call.1} parent=1 // pred_region
      _
    $region13: #{tpu_custom_call.1} parent=1 // pred_fallthru
      _
    // Predicated region
    $region14: #{tpu_custom_call.1} parent=1 // pred_check
      _
    $region15: #{tpu_custom_call.1} parent=1 // pred_check_branch
      %20 = sbr.rel (0) target = $region17
    $region16: #{tpu_custom_call.1} parent=1 // pred_region
      _
    $region17: #{tpu_custom_call.1} parent=1 // pred_fallthru
      _
    // Predicated region
    $region18: #{tpu_custom_call.1} parent=1 // pred_check
      _
    $region19: #{tpu_custom_call.1} parent=1 // pred_check_branch
      %22 = sbr.rel (0) target = $region21
    $region20: #{tpu_custom_call.1} parent=1 // pred_region
      %s24 = ssub.s32 2048, 2048
      %25 = vsyncadd [#allocation4], %s24
      %s26 = sshll.u32 [#allocation3], 4
      %s27 = int_to_ptr.vmem [resolvable:$true] %s26
      %32 = dma.hbm_to_vmem [thread:$0]  %s4, 2048, %s27, [#allocation4], 128, 128, 8
    $region21: #{tpu_custom_call.1} parent=1 // pred_fallthru
      _
    // Predicated region
    $region22: #{tpu_custom_call.1} parent=1 // pred_check
      _
    $region23: #{tpu_custom_call.1} parent=1 // pred_check_branch
      %34 = sbr.rel (0) target = $region25
    $region24: #{tpu_custom_call.1} parent=1 // pred_region
      _
    $region25: #{tpu_custom_call.1} parent=1 // pred_fallthru
      _
    // Predicated region
    $region26: #{tpu_custom_call.1} parent=1 // pred_check
      _
    $region27: #{tpu_custom_call.1} parent=1 // pred_check_branch
      %36 = sbr.rel (0) target = $region29
    $region28: #{tpu_custom_call.1} parent=1 // pred_region
      %37 = dma.done [#allocation4], 2048
    $region29: #{tpu_custom_call.1} parent=1 // pred_fallthru
      _
    %v38 = vld [vmem:[%s0] sm:$0xff]
    %v39 = vld [vmem:[%s0 + $0x8] sm:$0xff]
    %v40 = vld [vmem:[%s0 + $0x10] sm:$0xff]
    %v41 = vld [vmem:[%s0 + $0x18] sm:$0xff]
    %v42 = vld [vmem:[%s0 + $0x20] sm:$0xff]
    %v43 = vld [vmem:[%s0 + $0x28] sm:$0xff]
    %v44 = vld [vmem:[%s0 + $0x30] sm:$0xff]
    %v45 = vld [vmem:[%s0 + $0x38] sm:$0xff]
    %v46 = vld [vmem:[%s1] sm:$0xff]
    %v47 = vld [vmem:[%s1 + $0x8] sm:$0xff]
    %v48 = vld [vmem:[%s1 + $0x10] sm:$0xff]
    %v49 = vld [vmem:[%s1 + $0x18] sm:$0xff]
    %v50 = vld [vmem:[%s3] sm:$0x1]
    %v52 = vlaneseq
    %v53 = vshrl.u32 %v52, 7
    %v54 = vsub.s32 0, %v53
    %v55 = vrot.slane %v50, %v54
    %vm57 = vcmask 261120
    %v59 = vsel %vm57, %v38, 0
    %v62 = vsel %vm57, %v39, 0
    %v65 = vsel %vm57, %v40, 0
    %v68 = vsel %vm57, %v41, 0
    %v71 = vsel %vm57, %v42, 0
    %v74 = vsel %vm57, %v43, 0
    %v77 = vsel %vm57, %v44, 0
    %v80 = vsel %vm57, %v45, 0
    %82 = vmatprep.subr.mxu0 0.0
    %83 = vmatpush1.msra.mxu0 %v46
    %84 = vmatprep.subr.mxu0 0.0
    %85 = vmatpush1.msra.mxu0 %v47
    %86 = vmatprep.subr.mxu0 0.0
    %87 = vmatpush1.msra.mxu0 %v48
    %88 = vmatprep.subr.mxu0 0.0
    %89 = vmatpush1.msra.mxu0 %v49
    %90 = vmatprep.subr.mxu0 0.0
    %91 = vmatpush1.msra.mxu0 0.0
    %92 = vmatprep.subr.mxu0 0.0
    %93 = vmatpush1.msra.mxu0 0.0
    %94 = vmatprep.subr.mxu0 0.0
    %95 = vmatpush1.msra.mxu0 0.0
    %96 = vmatprep.subr.mxu0 0.0
    %97 = vmatpush1.msra.mxu0 0.0
    %98 = vmatprep.subr.mxu0 0.0
    %99 = vmatpush1.msra.mxu0 0.0
    %100 = vmatprep.subr.mxu0 0.0
    %101 = vmatpush1.msra.mxu0 0.0
    %102 = vmatprep.subr.mxu0 0.0
    %103 = vmatpush1.msra.mxu0 0.0
    %104 = vmatprep.subr.mxu0 0.0
    %105 = vmatpush1.msra.mxu0 0.0
    %106 = vmatprep.subr.mxu0 0.0
    %107 = vmatpush1.msra.mxu0 0.0
    %108 = vmatprep.subr.mxu0 0.0
    %109 = vmatpush1.msra.mxu0 0.0
    %110 = vmatprep.subr.mxu0 0.0
    %111 = vmatpush1.msra.mxu0 0.0
    %112 = vmatprep.subr.mxu0 0.0
    %113 = vmatpush1.msra.mxu0 0.0
    %114 = vmatprep.subr.mxu0 0.0
    %115 = vmatpush1.msra.mxu0 0.0
    %116 = vmatprep.subr.mxu0 0.0
    %117 = vmatpush1.msra.mxu0 0.0
    %118 = vmatprep.subr.mxu0 0.0
    %119 = vmatpush1.msra.mxu0 0.0
    %120 = vmatprep.subr.mxu0 0.0
    %121 = vmatpush1.msra.mxu0 0.0
    %122 = vmatprep.subr.mxu0 0.0
    %123 = vmatpush1.msra.mxu0 0.0
    %124 = vmatprep.subr.mxu0 0.0
    %125 = vmatpush1.msra.mxu0 0.0
    %126 = vmatprep.subr.mxu0 0.0
    %127 = vmatpush1.msra.mxu0 0.0
    %128 = vmatprep.subr.mxu0 0.0
    %129 = vmatpush1.msra.mxu0 0.0
    %130 = vmatprep.subr.mxu0 0.0
    %131 = vmatpush1.msra.mxu0 0.0
    %132 = vmatprep.subr.mxu0 0.0
    %133 = vmatpush1.msra.mxu0 0.0
    %134 = vmatprep.subr.mxu0 0.0
    %135 = vmatpush1.msra.mxu0 0.0
    %136 = vmatprep.subr.mxu0 0.0
    %137 = vmatpush1.msra.mxu0 0.0
    %138 = vmatprep.subr.mxu0 0.0
    %139 = vmatpush1.msra.mxu0 0.0
    %140 = vmatprep.subr.mxu0 0.0
    %141 = vmatpush1.msra.mxu0 0.0
    %142 = vmatprep.subr.mxu0 0.0
    %143 = vmatpush1.msra.mxu0 0.0
    %144 = vmatprep.subr.mxu0 0.0
    %145 = vmatpush1.msra.mxu0 0.0
    %146 = vmatprep.mubr.f32.mxu0 0.0
    %147 = vmatmul.mubr.f32.gmra.mrb[0].mxu0 %v59
    %v148 = vpop.f32.mrb[0].mxu0
    %v149 = vadd.f32 %v55, %v148
    %v150 = vpop.f32.mrb[0].mxu0
    %151 = vmatprep.mubr.f32.mxu0 0.0
    %152 = vmatmul.mubr.f32.gmra.mrb[0].mxu0 %v62
    %v153 = vpop.f32.mrb[0].mxu0
    %v154 = vadd.f32 %v55, %v153
    %v155 = vpop.f32.mrb[0].mxu0
    %156 = vmatprep.mubr.f32.mxu0 0.0
    %157 = vmatmul.mubr.f32.gmra.mrb[0].mxu0 %v65
    %v158 = vpop.f32.mrb[0].mxu0
    %v159 = vadd.f32 %v55, %v158
    %v160 = vpop.f32.mrb[0].mxu0
    %161 = vmatprep.mubr.f32.mxu0 0.0
    %162 = vmatmul.mubr.f32.gmra.mrb[0].mxu0 %v68
    %v163 = vpop.f32.mrb[0].mxu0
    %v164 = vadd.f32 %v55, %v163
    %v165 = vpop.f32.mrb[0].mxu0
    %166 = vmatprep.mubr.f32.mxu0 0.0
    %167 = vmatmul.mubr.f32.gmra.mrb[0].mxu0 %v71
    %v168 = vpop.f32.mrb[0].mxu0
    %v169 = vadd.f32 %v55, %v168
    %v170 = vpop.f32.mrb[0].mxu0
    %171 = vmatprep.mubr.f32.mxu0 0.0
    %172 = vmatmul.mubr.f32.gmra.mrb[0].mxu0 %v74
    %v173 = vpop.f32.mrb[0].mxu0
    %v174 = vadd.f32 %v55, %v173
    %v175 = vpop.f32.mrb[0].mxu0
    %176 = vmatprep.mubr.f32.mxu0 0.0
    %177 = vmatmul.mubr.f32.gmra.mrb[0].mxu0 %v77
    %v178 = vpop.f32.mrb[0].mxu0
    %v179 = vadd.f32 %v55, %v178
    %v180 = vpop.f32.mrb[0].mxu0
    %181 = vmatprep.mubr.f32.mxu0 0.0
    %182 = vmatmul.mubr.f32.gmra.mrb[0].mxu0 %v80
    %v183 = vpop.f32.mrb[0].mxu0
    %v184 = vadd.f32 %v55, %v183
    %v185 = vpop.f32.mrb[0].mxu0
    %186 = vdwg.mxu0
    %vm187 = vcmask 523264
    %188 = vst.msk [vmem:[#allocation2] sm:$0xff] %vm187, %v149
    %189 = vst.msk [vmem:[#allocation2 + $0x8] sm:$0xff] %vm187, %v154
    %190 = vst.msk [vmem:[#allocation2 + $0x10] sm:$0xff] %vm187, %v159
    %191 = vst.msk [vmem:[#allocation2 + $0x18] sm:$0xff] %vm187, %v164
    %192 = vst.msk [vmem:[#allocation2 + $0x20] sm:$0xff] %vm187, %v169
    %193 = vst.msk [vmem:[#allocation2 + $0x28] sm:$0xff] %vm187, %v174
    %194 = vst.msk [vmem:[#allocation2 + $0x30] sm:$0xff] %vm187, %v179
    %195 = vst.msk [vmem:[#allocation2 + $0x38] sm:$0xff] %vm187, %v184
    %v196 = vld [vmem:[%s2] sm:$0xff]
    %v197 = vld [vmem:[%s2 + $0x8] sm:$0xff]
    %v198 = vld [vmem:[#allocation2] sm:$0xff]
    %vm199 = vcmask 130048
    %v201 = vsel %vm199, 0.0, 0
    %203 = vmatprep.subr.mxu0 0.0
    %204 = vmatpush1.msra.mxu0 %v196
    %205 = vmatprep.subr.mxu0 0.0
    %206 = vmatpush1.msra.mxu0 %v197
    %207 = vmatprep.subr.mxu0 0.0
    %208 = vmatpush1.msra.mxu0 0.0
    %209 = vmatprep.subr.mxu0 0.0
    %210 = vmatpush1.msra.mxu0 0.0
    %211 = vmatprep.subr.mxu0 0.0
    %212 = vmatpush1.msra.mxu0 0.0
    %213 = vmatprep.subr.mxu0 0.0
    %214 = vmatpush1.msra.mxu0 0.0
    %215 = vmatprep.subr.mxu0 0.0
    %216 = vmatpush1.msra.mxu0 0.0
    %217 = vmatprep.subr.mxu0 0.0
    %218 = vmatpush1.msra.mxu0 0.0
    %219 = vmatprep.subr.mxu0 0.0
    %220 = vmatpush1.msra.mxu0 0.0
    %221 = vmatprep.subr.mxu0 0.0
    %222 = vmatpush1.msra.mxu0 0.0
    %223 = vmatprep.subr.mxu0 0.0
    %224 = vmatpush1.msra.mxu0 0.0
    %225 = vmatprep.subr.mxu0 0.0
    %226 = vmatpush1.msra.mxu0 0.0
    %227 = vmatprep.subr.mxu0 0.0
    %228 = vmatpush1.msra.mxu0 0.0
    %229 = vmatprep.subr.mxu0 0.0
    %230 = vmatpush1.msra.mxu0 0.0
    %231 = vmatprep.subr.mxu0 0.0
    %232 = vmatpush1.msra.mxu0 0.0
    %233 = vmatprep.subr.mxu0 0.0
    %234 = vmatpush1.msra.mxu0 0.0
    %235 = vmatprep.subr.mxu0 0.0
    %236 = vmatpush1.msra.mxu0 0.0
    %237 = vmatprep.subr.mxu0 0.0
    %238 = vmatpush1.msra.mxu0 0.0
    %239 = vmatprep.subr.mxu0 0.0
    %240 = vmatpush1.msra.mxu0 0.0
    %241 = vmatprep.subr.mxu0 0.0
    %242 = vmatpush1.msra.mxu0 0.0
    %243 = vmatprep.subr.mxu0 0.0
    %244 = vmatpush1.msra.mxu0 0.0
    %245 = vmatprep.subr.mxu0 0.0
    %246 = vmatpush1.msra.mxu0 0.0
    %247 = vmatprep.subr.mxu0 0.0
    %248 = vmatpush1.msra.mxu0 0.0
    %249 = vmatprep.subr.mxu0 0.0
    %250 = vmatpush1.msra.mxu0 0.0
    %251 = vmatprep.subr.mxu0 0.0
    %252 = vmatpush1.msra.mxu0 0.0
    %253 = vmatprep.subr.mxu0 0.0
    %254 = vmatpush1.msra.mxu0 0.0
    %255 = vmatprep.subr.mxu0 0.0
    %256 = vmatpush1.msra.mxu0 0.0
    %257 = vmatprep.subr.mxu0 0.0
    %258 = vmatpush1.msra.mxu0 0.0
    %259 = vmatprep.subr.mxu0 0.0
    %260 = vmatpush1.msra.mxu0 0.0
    %261 = vmatprep.subr.mxu0 0.0
    %262 = vmatpush1.msra.mxu0 0.0
    %263 = vmatprep.subr.mxu0 0.0
    %264 = vmatpush1.msra.mxu0 0.0
    %265 = vmatprep.subr.mxu0 0.0
    %266 = vmatpush1.msra.mxu0 0.0
    %267 = vmatprep.mubr.f32.mxu0 0.0
    %268 = vmatmul.mubr.f32.gmra.mrb[0].mxu0 %v201
    %v269 = vpop.f32.mrb[0].mxu0
    %v270 = vadd.f32 0.0, %v269
    %v271 = vpop.f32.mrb[0].mxu0
    %272 = vdwg.mxu0
    %v273 = vadd.f32 %v198, %v270
    %v274 = vxor.u32 %v273, 2147483648
    %v275 = vmul.f32 %v274, 1.442695
    %v276 = vpow.pop %v275
    %v277 = vadd.f32 %v276, 1.0
    %v278 = vrcp.pop %v277
    %v279 = vmul.f32 1.0, %v278
    %v280 = vtanh.pop %v273
    %v281 = vmul.f32 %v279, 0.0
    %283 = vrot.lane.b32.xlu0 %v280, 80
    %v284 = vpop.permute.xlu0 %283
    %v286 = vmul.f32 %v279, %v284
    %288 = vrot.lane.b32.xlu0 %v286, 16
    %v289 = vpop.permute.xlu0 %288
    %v291 = vadd.f32 %v281, %v289
    %v292 = vtanh.pop %v291
    %294 = vrot.lane.b32.xlu0 %v292, 16
    %v295 = vpop.permute.xlu0 %294
    %v297 = vmul.f32 %v279, %v295
    %v298 = vld [vmem:[#allocation2 + $0x8] sm:$0xff]
    %300 = vrot.lane.b32.xlu0 %v297, 96
    %v301 = vpop.permute.xlu0 %300
    %v302 = vsel %vm199, %v301, 0
    %304 = vmatprep.subr.mxu0 0.0
    %305 = vmatpush1.msra.mxu0 %v196
    %306 = vmatprep.subr.mxu0 0.0
    %307 = vmatpush1.msra.mxu0 %v197
    %308 = vmatprep.subr.mxu0 0.0
    %309 = vmatpush1.msra.mxu0 0.0
    %310 = vmatprep.subr.mxu0 0.0
    %311 = vmatpush1.msra.mxu0 0.0
    %312 = vmatprep.subr.mxu0 0.0
    %313 = vmatpush1.msra.mxu0 0.0
    %314 = vmatprep.subr.mxu0 0.0
    %315 = vmatpush1.msra.mxu0 0.0
    %316 = vmatprep.subr.mxu0 0.0
    %317 = vmatpush1.msra.mxu0 0.0
    %318 = vmatprep.subr.mxu0 0.0
    %319 = vmatpush1.msra.mxu0 0.0
    %320 = vmatprep.subr.mxu0 0.0
    %321 = vmatpush1.msra.mxu0 0.0
    %322 = vmatprep.subr.mxu0 0.0
    %323 = vmatpush1.msra.mxu0 0.0
    %324 = vmatprep.subr.mxu0 0.0
    %325 = vmatpush1.msra.mxu0 0.0
    %326 = vmatprep.subr.mxu0 0.0
    %327 = vmatpush1.msra.mxu0 0.0
    %328 = vmatprep.subr.mxu0 0.0
    %329 = vmatpush1.msra.mxu0 0.0
    %330 = vmatprep.subr.mxu0 0.0
    %331 = vmatpush1.msra.mxu0 0.0
    %332 = vmatprep.subr.mxu0 0.0
    %333 = vmatpush1.msra.mxu0 0.0
    %334 = vmatprep.subr.mxu0 0.0
    %335 = vmatpush1.msra.mxu0 0.0
    %336 = vmatprep.subr.mxu0 0.0
    %337 = vmatpush1.msra.mxu0 0.0
    %338 = vmatprep.subr.mxu0 0.0
    %339 = vmatpush1.msra.mxu0 0.0
    %340 = vmatprep.subr.mxu0 0.0
    %341 = vmatpush1.msra.mxu0 0.0
    %342 = vmatprep.subr.mxu0 0.0
    %343 = vmatpush1.msra.mxu0 0.0
    %344 = vmatprep.subr.mxu0 0.0
    %345 = vmatpush1.msra.mxu0 0.0
    %346 = vmatprep.subr.mxu0 0.0
    %347 = vmatpush1.msra.mxu0 0.0
    %348 = vmatprep.subr.mxu0 0.0
    %349 = vmatpush1.msra.mxu0 0.0
    %350 = vmatprep.subr.mxu0 0.0
    %351 = vmatpush1.msra.mxu0 0.0
    %352 = vmatprep.subr.mxu0 0.0
    %353 = vmatpush1.msra.mxu0 0.0
    %354 = vmatprep.subr.mxu0 0.0
    %355 = vmatpush1.msra.mxu0 0.0
    %356 = vmatprep.subr.mxu0 0.0
    %357 = vmatpush1.msra.mxu0 0.0
    %358 = vmatprep.subr.mxu0 0.0
    %359 = vmatpush1.msra.mxu0 0.0
    %360 = vmatprep.subr.mxu0 0.0
    %361 = vmatpush1.msra.mxu0 0.0
    %362 = vmatprep.subr.mxu0 0.0
    %363 = vmatpush1.msra.mxu0 0.0
    %364 = vmatprep.subr.mxu0 0.0
    %365 = vmatpush1.msra.mxu0 0.0
    %366 = vmatprep.subr.mxu0 0.0
    %367 = vmatpush1.msra.mxu0 0.0
    %368 = vmatprep.mubr.f32.mxu0 0.0
    %369 = vmatmul.mubr.f32.gmra.mrb[0].mxu0 %v302
    %v370 = vpop.f32.mrb[0].mxu0
    %v371 = vadd.f32 0.0, %v370
    %v372 = vpop.f32.mrb[0].mxu0
    %373 = vdwg.mxu0
    %v374 = vadd.f32 %v298, %v371
    %v375 = vxor.u32 %v374, 2147483648
    %v376 = vmul.f32 %v375, 1.442695
    %v377 = vpow.pop %v376
    %v378 = vadd.f32 %v377, 1.0
    %v379 = vrcp.pop %v378
    %v380 = vmul.f32 1.0, %v379
    %v381 = vtanh.pop %v374
    %v382 = vmul.f32 %v380, %v291
    %384 = vrot.lane.b32.xlu0 %v381, 80
    %v385 = vpop.permute.xlu0 %384
    %v387 = vmul.f32 %v380, %v385
    %389 = vrot.lane.b32.xlu0 %v387, 16
    %v390 = vpop.permute.xlu0 %389
    %v392 = vadd.f32 %v382, %v390
    %v393 = vtanh.pop %v392
    %395 = vrot.lane.b32.xlu0 %v393, 16
    %v396 = vpop.permute.xlu0 %395
    %v398 = vmul.f32 %v380, %v396
    %v399 = vld [vmem:[#allocation2 + $0x10] sm:$0xff]
    %401 = vrot.lane.b32.xlu0 %v398, 96
    %v402 = vpop.permute.xlu0 %401
    %v403 = vsel %vm199, %v402, 0
    %405 = vmatprep.subr.mxu0 0.0
    %406 = vmatpush1.msra.mxu0 %v196
    %407 = vmatprep.subr.mxu0 0.0
    %408 = vmatpush1.msra.mxu0 %v197
    %409 = vmatprep.subr.mxu0 0.0
    %410 = vmatpush1.msra.mxu0 0.0
    %411 = vmatprep.subr.mxu0 0.0
    %412 = vmatpush1.msra.mxu0 0.0
    %413 = vmatprep.subr.mxu0 0.0
    %414 = vmatpush1.msra.mxu0 0.0
    %415 = vmatprep.subr.mxu0 0.0
    %416 = vmatpush1.msra.mxu0 0.0
    %417 = vmatprep.subr.mxu0 0.0
    %418 = vmatpush1.msra.mxu0 0.0
    %419 = vmatprep.subr.mxu0 0.0
    %420 = vmatpush1.msra.mxu0 0.0
    %421 = vmatprep.subr.mxu0 0.0
    %422 = vmatpush1.msra.mxu0 0.0
    %423 = vmatprep.subr.mxu0 0.0
    %424 = vmatpush1.msra.mxu0 0.0
    %425 = vmatprep.subr.mxu0 0.0
    %426 = vmatpush1.msra.mxu0 0.0
    %427 = vmatprep.subr.mxu0 0.0
    %428 = vmatpush1.msra.mxu0 0.0
    %429 = vmatprep.subr.mxu0 0.0
    %430 = vmatpush1.msra.mxu0 0.0
    %431 = vmatprep.subr.mxu0 0.0
    %432 = vmatpush1.msra.mxu0 0.0
    %433 = vmatprep.subr.mxu0 0.0
    %434 = vmatpush1.msra.mxu0 0.0
    %435 = vmatprep.subr.mxu0 0.0
    %436 = vmatpush1.msra.mxu0 0.0
    %437 = vmatprep.subr.mxu0 0.0
    %438 = vmatpush1.msra.mxu0 0.0
    %439 = vmatprep.subr.mxu0 0.0
    %440 = vmatpush1.msra.mxu0 0.0
    %441 = vmatprep.subr.mxu0 0.0
    %442 = vmatpush1.msra.mxu0 0.0
    %443 = vmatprep.subr.mxu0 0.0
    %444 = vmatpush1.msra.mxu0 0.0
    %445 = vmatprep.subr.mxu0 0.0
    %446 = vmatpush1.msra.mxu0 0.0
    %447 = vmatprep.subr.mxu0 0.0
    %448 = vmatpush1.msra.mxu0 0.0
    %449 = vmatprep.subr.mxu0 0.0
    %450 = vmatpush1.msra.mxu0 0.0
    %451 = vmatprep.subr.mxu0 0.0
    %452 = vmatpush1.msra.mxu0 0.0
    %453 = vmatprep.subr.mxu0 0.0
    %454 = vmatpush1.msra.mxu0 0.0
    %455 = vmatprep.subr.mxu0 0.0
    %456 = vmatpush1.msra.mxu0 0.0
    %457 = vmatprep.subr.mxu0 0.0
    %458 = vmatpush1.msra.mxu0 0.0
    %459 = vmatprep.subr.mxu0 0.0
    %460 = vmatpush1.msra.mxu0 0.0
    %461 = vmatprep.subr.mxu0 0.0
    %462 = vmatpush1.msra.mxu0 0.0
    %463 = vmatprep.subr.mxu0 0.0
    %464 = vmatpush1.msra.mxu0 0.0
    %465 = vmatprep.subr.mxu0 0.0
    %466 = vmatpush1.msra.mxu0 0.0
    %467 = vmatprep.subr.mxu0 0.0
    %468 = vmatpush1.msra.mxu0 0.0
    %469 = vmatprep.mubr.f32.mxu0 0.0
    %470 = vmatmul.mubr.f32.gmra.mrb[0].mxu0 %v403
    %v471 = vpop.f32.mrb[0].mxu0
    %v472 = vadd.f32 0.0, %v471
    %v473 = vpop.f32.mrb[0].mxu0
    %474 = vdwg.mxu0
    %v475 = vadd.f32 %v399, %v472
    %v476 = vxor.u32 %v475, 2147483648
    %v477 = vmul.f32 %v476, 1.442695
    %v478 = vpow.pop %v477
    %v479 = vadd.f32 %v478, 1.0
    %v480 = vrcp.pop %v479
    %v481 = vmul.f32 1.0, %v480
    %v482 = vtanh.pop %v475
    %v483 = vmul.f32 %v481, %v392
    %485 = vrot.lane.b32.xlu0 %v482, 80
    %v486 = vpop.permute.xlu0 %485
    %v488 = vmul.f32 %v481, %v486
    %490 = vrot.lane.b32.xlu0 %v488, 16
    %v491 = vpop.permute.xlu0 %490
    %v493 = vadd.f32 %v483, %v491
    %v494 = vtanh.pop %v493
    %496 = vrot.lane.b32.xlu0 %v494, 16
    %v497 = vpop.permute.xlu0 %496
    %v499 = vmul.f32 %v481, %v497
    %v500 = vld [vmem:[#allocation2 + $0x18] sm:$0xff]
    %502 = vrot.lane.b32.xlu0 %v499, 96
    %v503 = vpop.permute.xlu0 %502
    %v504 = vsel %vm199, %v503, 0
    %506 = vmatprep.subr.mxu0 0.0
    %507 = vmatpush1.msra.mxu0 %v196
    %508 = vmatprep.subr.mxu0 0.0
    %509 = vmatpush1.msra.mxu0 %v197
    %510 = vmatprep.subr.mxu0 0.0
    %511 = vmatpush1.msra.mxu0 0.0
    %512 = vmatprep.subr.mxu0 0.0
    %513 = vmatpush1.msra.mxu0 0.0
    %514 = vmatprep.subr.mxu0 0.0
    %515 = vmatpush1.msra.mxu0 0.0
    %516 = vmatprep.subr.mxu0 0.0
    %517 = vmatpush1.msra.mxu0 0.0
    %518 = vmatprep.subr.mxu0 0.0
    %519 = vmatpush1.msra.mxu0 0.0
    %520 = vmatprep.subr.mxu0 0.0
    %521 = vmatpush1.msra.mxu0 0.0
    %522 = vmatprep.subr.mxu0 0.0
    %523 = vmatpush1.msra.mxu0 0.0
    %524 = vmatprep.subr.mxu0 0.0
    %525 = vmatpush1.msra.mxu0 0.0
    %526 = vmatprep.subr.mxu0 0.0
    %527 = vmatpush1.msra.mxu0 0.0
    %528 = vmatprep.subr.mxu0 0.0
    %529 = vmatpush1.msra.mxu0 0.0
    %530 = vmatprep.subr.mxu0 0.0
    %531 = vmatpush1.msra.mxu0 0.0
    %532 = vmatprep.subr.mxu0 0.0
    %533 = vmatpush1.msra.mxu0 0.0
    %534 = vmatprep.subr.mxu0 0.0
    %535 = vmatpush1.msra.mxu0 0.0
    %536 = vmatprep.subr.mxu0 0.0
    %537 = vmatpush1.msra.mxu0 0.0
    %538 = vmatprep.subr.mxu0 0.0
    %539 = vmatpush1.msra.mxu0 0.0
    %540 = vmatprep.subr.mxu0 0.0
    %541 = vmatpush1.msra.mxu0 0.0
    %542 = vmatprep.subr.mxu0 0.0
    %543 = vmatpush1.msra.mxu0 0.0
    %544 = vmatprep.subr.mxu0 0.0
    %545 = vmatpush1.msra.mxu0 0.0
    %546 = vmatprep.subr.mxu0 0.0
    %547 = vmatpush1.msra.mxu0 0.0
    %548 = vmatprep.subr.mxu0 0.0
    %549 = vmatpush1.msra.mxu0 0.0
    %550 = vmatprep.subr.mxu0 0.0
    %551 = vmatpush1.msra.mxu0 0.0
    %552 = vmatprep.subr.mxu0 0.0
    %553 = vmatpush1.msra.mxu0 0.0
    %554 = vmatprep.subr.mxu0 0.0
    %555 = vmatpush1.msra.mxu0 0.0
    %556 = vmatprep.subr.mxu0 0.0
    %557 = vmatpush1.msra.mxu0 0.0
    %558 = vmatprep.subr.mxu0 0.0
    %559 = vmatpush1.msra.mxu0 0.0
    %560 = vmatprep.subr.mxu0 0.0
    %561 = vmatpush1.msra.mxu0 0.0
    %562 = vmatprep.subr.mxu0 0.0
    %563 = vmatpush1.msra.mxu0 0.0
    %564 = vmatprep.subr.mxu0 0.0
    %565 = vmatpush1.msra.mxu0 0.0
    %566 = vmatprep.subr.mxu0 0.0
    %567 = vmatpush1.msra.mxu0 0.0
    %568 = vmatprep.subr.mxu0 0.0
    %569 = vmatpush1.msra.mxu0 0.0
    %570 = vmatprep.mubr.f32.mxu0 0.0
    %571 = vmatmul.mubr.f32.gmra.mrb[0].mxu0 %v504
    %v572 = vpop.f32.mrb[0].mxu0
    %v573 = vadd.f32 0.0, %v572
    %v574 = vpop.f32.mrb[0].mxu0
    %575 = vdwg.mxu0
    %v576 = vadd.f32 %v500, %v573
    %v577 = vxor.u32 %v576, 2147483648
    %v578 = vmul.f32 %v577, 1.442695
    %v579 = vpow.pop %v578
    %v580 = vadd.f32 %v579, 1.0
    %v581 = vrcp.pop %v580
    %v582 = vmul.f32 1.0, %v581
    %v583 = vtanh.pop %v576
    %v584 = vmul.f32 %v582, %v493
    %586 = vrot.lane.b32.xlu0 %v583, 80
    %v587 = vpop.permute.xlu0 %586
    %v589 = vmul.f32 %v582, %v587
    %591 = vrot.lane.b32.xlu0 %v589, 16
    %v592 = vpop.permute.xlu0 %591
    %v594 = vadd.f32 %v584, %v592
    %v595 = vtanh.pop %v594
    %597 = vrot.lane.b32.xlu0 %v595, 16
    %v598 = vpop.permute.xlu0 %597
    %v600 = vmul.f32 %v582, %v598
    %v601 = vld [vmem:[#allocation2 + $0x20] sm:$0xff]
    %603 = vrot.lane.b32.xlu0 %v600, 96
    %v604 = vpop.permute.xlu0 %603
    %v605 = vsel %vm199, %v604, 0
    %607 = vmatprep.subr.mxu0 0.0
    %608 = vmatpush1.msra.mxu0 %v196
    %609 = vmatprep.subr.mxu0 0.0
    %610 = vmatpush1.msra.mxu0 %v197
    %611 = vmatprep.subr.mxu0 0.0
    %612 = vmatpush1.msra.mxu0 0.0
    %613 = vmatprep.subr.mxu0 0.0
    %614 = vmatpush1.msra.mxu0 0.0
    %615 = vmatprep.subr.mxu0 0.0
    %616 = vmatpush1.msra.mxu0 0.0
    %617 = vmatprep.subr.mxu0 0.0
    %618 = vmatpush1.msra.mxu0 0.0
    %619 = vmatprep.subr.mxu0 0.0
    %620 = vmatpush1.msra.mxu0 0.0
    %621 = vmatprep.subr.mxu0 0.0
    %622 = vmatpush1.msra.mxu0 0.0
    %623 = vmatprep.subr.mxu0 0.0
    %624 = vmatpush1.msra.mxu0 0.0
    %625 = vmatprep.subr.mxu0 0.0
    %626 = vmatpush1.msra.mxu0 0.0
    %627 = vmatprep.subr.mxu0 0.0
    %628 = vmatpush1.msra.mxu0 0.0
    %629 = vmatprep.subr.mxu0 0.0
    %630 = vmatpush1.msra.mxu0 0.0
    %631 = vmatprep.subr.mxu0 0.0
    %632 = vmatpush1.msra.mxu0 0.0
    %633 = vmatprep.subr.mxu0 0.0
    %634 = vmatpush1.msra.mxu0 0.0
    %635 = vmatprep.subr.mxu0 0.0
    %636 = vmatpush1.msra.mxu0 0.0
    %637 = vmatprep.subr.mxu0 0.0
    %638 = vmatpush1.msra.mxu0 0.0
    %639 = vmatprep.subr.mxu0 0.0
    %640 = vmatpush1.msra.mxu0 0.0
    %641 = vmatprep.subr.mxu0 0.0
    %642 = vmatpush1.msra.mxu0 0.0
    %643 = vmatprep.subr.mxu0 0.0
    %644 = vmatpush1.msra.mxu0 0.0
    %645 = vmatprep.subr.mxu0 0.0
    %646 = vmatpush1.msra.mxu0 0.0
    %647 = vmatprep.subr.mxu0 0.0
    %648 = vmatpush1.msra.mxu0 0.0
    %649 = vmatprep.subr.mxu0 0.0
    %650 = vmatpush1.msra.mxu0 0.0
    %651 = vmatprep.subr.mxu0 0.0
    %652 = vmatpush1.msra.mxu0 0.0
    %653 = vmatprep.subr.mxu0 0.0
    %654 = vmatpush1.msra.mxu0 0.0
    %655 = vmatprep.subr.mxu0 0.0
    %656 = vmatpush1.msra.mxu0 0.0
    %657 = vmatprep.subr.mxu0 0.0
    %658 = vmatpush1.msra.mxu0 0.0
    %659 = vmatprep.subr.mxu0 0.0
    %660 = vmatpush1.msra.mxu0 0.0
    %661 = vmatprep.subr.mxu0 0.0
    %662 = vmatpush1.msra.mxu0 0.0
    %663 = vmatprep.subr.mxu0 0.0
    %664 = vmatpush1.msra.mxu0 0.0
    %665 = vmatprep.subr.mxu0 0.0
    %666 = vmatpush1.msra.mxu0 0.0
    %667 = vmatprep.subr.mxu0 0.0
    %668 = vmatpush1.msra.mxu0 0.0
    %669 = vmatprep.subr.mxu0 0.0
    %670 = vmatpush1.msra.mxu0 0.0
    %671 = vmatprep.mubr.f32.mxu0 0.0
    %672 = vmatmul.mubr.f32.gmra.mrb[0].mxu0 %v605
    %v673 = vpop.f32.mrb[0].mxu0
    %v674 = vadd.f32 0.0, %v673
    %v675 = vpop.f32.mrb[0].mxu0
    %676 = vdwg.mxu0
    %v677 = vadd.f32 %v601, %v674
    %v678 = vxor.u32 %v677, 2147483648
    %v679 = vmul.f32 %v678, 1.442695
    %v680 = vpow.pop %v679
    %v681 = vadd.f32 %v680, 1.0
    %v682 = vrcp.pop %v681
    %v683 = vmul.f32 1.0, %v682
    %v684 = vtanh.pop %v677
    %v685 = vmul.f32 %v683, %v594
    %687 = vrot.lane.b32.xlu0 %v684, 80
    %v688 = vpop.permute.xlu0 %687
    %v690 = vmul.f32 %v683, %v688
    %692 = vrot.lane.b32.xlu0 %v690, 16
    %v693 = vpop.permute.xlu0 %692
    %v695 = vadd.f32 %v685, %v693
    %v696 = vtanh.pop %v695
    %698 = vrot.lane.b32.xlu0 %v696, 16
    %v699 = vpop.permute.xlu0 %698
    %v701 = vmul.f32 %v683, %v699
    %v702 = vld [vmem:[#allocation2 + $0x28] sm:$0xff]
    %704 = vrot.lane.b32.xlu0 %v701, 96
    %v705 = vpop.permute.xlu0 %704
    %v706 = vsel %vm199, %v705, 0
    %708 = vmatprep.subr.mxu0 0.0
    %709 = vmatpush1.msra.mxu0 %v196
    %710 = vmatprep.subr.mxu0 0.0
    %711 = vmatpush1.msra.mxu0 %v197
    %712 = vmatprep.subr.mxu0 0.0
    %713 = vmatpush1.msra.mxu0 0.0
    %714 = vmatprep.subr.mxu0 0.0
    %715 = vmatpush1.msra.mxu0 0.0
    %716 = vmatprep.subr.mxu0 0.0
    %717 = vmatpush1.msra.mxu0 0.0
    %718 = vmatprep.subr.mxu0 0.0
    %719 = vmatpush1.msra.mxu0 0.0
    %720 = vmatprep.subr.mxu0 0.0
    %721 = vmatpush1.msra.mxu0 0.0
    %722 = vmatprep.subr.mxu0 0.0
    %723 = vmatpush1.msra.mxu0 0.0
    %724 = vmatprep.subr.mxu0 0.0
    %725 = vmatpush1.msra.mxu0 0.0
    %726 = vmatprep.subr.mxu0 0.0
    %727 = vmatpush1.msra.mxu0 0.0
    %728 = vmatprep.subr.mxu0 0.0
    %729 = vmatpush1.msra.mxu0 0.0
    %730 = vmatprep.subr.mxu0 0.0
    %731 = vmatpush1.msra.mxu0 0.0
    %732 = vmatprep.subr.mxu0 0.0
    %733 = vmatpush1.msra.mxu0 0.0
    %734 = vmatprep.subr.mxu0 0.0
    %735 = vmatpush1.msra.mxu0 0.0
    %736 = vmatprep.subr.mxu0 0.0
    %737 = vmatpush1.msra.mxu0 0.0
    %738 = vmatprep.subr.mxu0 0.0
    %739 = vmatpush1.msra.mxu0 0.0
    %740 = vmatprep.subr.mxu0 0.0
    %741 = vmatpush1.msra.mxu0 0.0
    %742 = vmatprep.subr.mxu0 0.0
    %743 = vmatpush1.msra.mxu0 0.0
    %744 = vmatprep.subr.mxu0 0.0
    %745 = vmatpush1.msra.mxu0 0.0
    %746 = vmatprep.subr.mxu0 0.0
    %747 = vmatpush1.msra.mxu0 0.0
    %748 = vmatprep.subr.mxu0 0.0
    %749 = vmatpush1.msra.mxu0 0.0
    %750 = vmatprep.subr.mxu0 0.0
    %751 = vmatpush1.msra.mxu0 0.0
    %752 = vmatprep.subr.mxu0 0.0
    %753 = vmatpush1.msra.mxu0 0.0
    %754 = vmatprep.subr.mxu0 0.0
    %755 = vmatpush1.msra.mxu0 0.0
    %756 = vmatprep.subr.mxu0 0.0
    %757 = vmatpush1.msra.mxu0 0.0
    %758 = vmatprep.subr.mxu0 0.0
    %759 = vmatpush1.msra.mxu0 0.0
    %760 = vmatprep.subr.mxu0 0.0
    %761 = vmatpush1.msra.mxu0 0.0
    %762 = vmatprep.subr.mxu0 0.0
    %763 = vmatpush1.msra.mxu0 0.0
    %764 = vmatprep.subr.mxu0 0.0
    %765 = vmatpush1.msra.mxu0 0.0
    %766 = vmatprep.subr.mxu0 0.0
    %767 = vmatpush1.msra.mxu0 0.0
    %768 = vmatprep.subr.mxu0 0.0
    %769 = vmatpush1.msra.mxu0 0.0
    %770 = vmatprep.subr.mxu0 0.0
    %771 = vmatpush1.msra.mxu0 0.0
    %772 = vmatprep.mubr.f32.mxu0 0.0
    %773 = vmatmul.mubr.f32.gmra.mrb[0].mxu0 %v706
    %v774 = vpop.f32.mrb[0].mxu0
    %v775 = vadd.f32 0.0, %v774
    %v776 = vpop.f32.mrb[0].mxu0
    %777 = vdwg.mxu0
    %v778 = vadd.f32 %v702, %v775
    %v779 = vxor.u32 %v778, 2147483648
    %v780 = vmul.f32 %v779, 1.442695
    %v781 = vpow.pop %v780
    %v782 = vadd.f32 %v781, 1.0
    %v783 = vrcp.pop %v782
    %v784 = vmul.f32 1.0, %v783
    %v785 = vtanh.pop %v778
    %v786 = vmul.f32 %v784, %v695
    %788 = vrot.lane.b32.xlu0 %v785, 80
    %v789 = vpop.permute.xlu0 %788
    %v791 = vmul.f32 %v784, %v789
    %793 = vrot.lane.b32.xlu0 %v791, 16
    %v794 = vpop.permute.xlu0 %793
    %v796 = vadd.f32 %v786, %v794
    %v797 = vtanh.pop %v796
    %799 = vrot.lane.b32.xlu0 %v797, 16
    %v800 = vpop.permute.xlu0 %799
    %v802 = vmul.f32 %v784, %v800
    %v803 = vld [vmem:[#allocation2 + $0x30] sm:$0xff]
    %805 = vrot.lane.b32.xlu0 %v802, 96
    %v806 = vpop.permute.xlu0 %805
    %v807 = vsel %vm199, %v806, 0
    %809 = vmatprep.subr.mxu0 0.0
    %810 = vmatpush1.msra.mxu0 %v196
    %811 = vmatprep.subr.mxu0 0.0
    %812 = vmatpush1.msra.mxu0 %v197
    %813 = vmatprep.subr.mxu0 0.0
    %814 = vmatpush1.msra.mxu0 0.0
    %815 = vmatprep.subr.mxu0 0.0
    %816 = vmatpush1.msra.mxu0 0.0
    %817 = vmatprep.subr.mxu0 0.0
    %818 = vmatpush1.msra.mxu0 0.0
    %819 = vmatprep.subr.mxu0 0.0
    %820 = vmatpush1.msra.mxu0 0.0
    %821 = vmatprep.subr.mxu0 0.0
    %822 = vmatpush1.msra.mxu0 0.0
    %823 = vmatprep.subr.mxu0 0.0
    %824 = vmatpush1.msra.mxu0 0.0
    %825 = vmatprep.subr.mxu0 0.0
    %826 = vmatpush1.msra.mxu0 0.0
    %827 = vmatprep.subr.mxu0 0.0
    %828 = vmatpush1.msra.mxu0 0.0
    %829 = vmatprep.subr.mxu0 0.0
    %830 = vmatpush1.msra.mxu0 0.0
    %831 = vmatprep.subr.mxu0 0.0
    %832 = vmatpush1.msra.mxu0 0.0
    %833 = vmatprep.subr.mxu0 0.0
    %834 = vmatpush1.msra.mxu0 0.0
    %835 = vmatprep.subr.mxu0 0.0
    %836 = vmatpush1.msra.mxu0 0.0
    %837 = vmatprep.subr.mxu0 0.0
    %838 = vmatpush1.msra.mxu0 0.0
    %839 = vmatprep.subr.mxu0 0.0
    %840 = vmatpush1.msra.mxu0 0.0
    %841 = vmatprep.subr.mxu0 0.0
    %842 = vmatpush1.msra.mxu0 0.0
    %843 = vmatprep.subr.mxu0 0.0
    %844 = vmatpush1.msra.mxu0 0.0
    %845 = vmatprep.subr.mxu0 0.0
    %846 = vmatpush1.msra.mxu0 0.0
    %847 = vmatprep.subr.mxu0 0.0
    %848 = vmatpush1.msra.mxu0 0.0
    %849 = vmatprep.subr.mxu0 0.0
    %850 = vmatpush1.msra.mxu0 0.0
    %851 = vmatprep.subr.mxu0 0.0
    %852 = vmatpush1.msra.mxu0 0.0
    %853 = vmatprep.subr.mxu0 0.0
    %854 = vmatpush1.msra.mxu0 0.0
    %855 = vmatprep.subr.mxu0 0.0
    %856 = vmatpush1.msra.mxu0 0.0
    %857 = vmatprep.subr.mxu0 0.0
    %858 = vmatpush1.msra.mxu0 0.0
    %859 = vmatprep.subr.mxu0 0.0
    %860 = vmatpush1.msra.mxu0 0.0
    %861 = vmatprep.subr.mxu0 0.0
    %862 = vmatpush1.msra.mxu0 0.0
    %863 = vmatprep.subr.mxu0 0.0
    %864 = vmatpush1.msra.mxu0 0.0
    %865 = vmatprep.subr.mxu0 0.0
    %866 = vmatpush1.msra.mxu0 0.0
    %867 = vmatprep.subr.mxu0 0.0
    %868 = vmatpush1.msra.mxu0 0.0
    %869 = vmatprep.subr.mxu0 0.0
    %870 = vmatpush1.msra.mxu0 0.0
    %871 = vmatprep.subr.mxu0 0.0
    %872 = vmatpush1.msra.mxu0 0.0
    %873 = vmatprep.mubr.f32.mxu0 0.0
    %874 = vmatmul.mubr.f32.gmra.mrb[0].mxu0 %v807
    %v875 = vpop.f32.mrb[0].mxu0
    %v876 = vadd.f32 0.0, %v875
    %v877 = vpop.f32.mrb[0].mxu0
    %878 = vdwg.mxu0
    %v879 = vadd.f32 %v803, %v876
    %v880 = vxor.u32 %v879, 2147483648
    %v881 = vmul.f32 %v880, 1.442695
    %v882 = vpow.pop %v881
    %v883 = vadd.f32 %v882, 1.0
    %v884 = vrcp.pop %v883
    %v885 = vmul.f32 1.0, %v884
    %v886 = vtanh.pop %v879
    %v887 = vmul.f32 %v885, %v796
    %889 = vrot.lane.b32.xlu0 %v886, 80
    %v890 = vpop.permute.xlu0 %889
    %v892 = vmul.f32 %v885, %v890
    %894 = vrot.lane.b32.xlu0 %v892, 16
    %v895 = vpop.permute.xlu0 %894
    %v897 = vadd.f32 %v887, %v895
    %v898 = vtanh.pop %v897
    %900 = vrot.lane.b32.xlu0 %v898, 16
    %v901 = vpop.permute.xlu0 %900
    %v903 = vmul.f32 %v885, %v901
    %v904 = vld [vmem:[#allocation2 + $0x38] sm:$0xff]
    %906 = vrot.lane.b32.xlu0 %v903, 96
    %v907 = vpop.permute.xlu0 %906
    %v908 = vsel %vm199, %v907, 0
    %910 = vmatprep.subr.mxu0 0.0
    %911 = vmatpush1.msra.mxu0 %v196
    %912 = vmatprep.subr.mxu0 0.0
    %913 = vmatpush1.msra.mxu0 %v197
    %914 = vmatprep.subr.mxu0 0.0
    %915 = vmatpush1.msra.mxu0 0.0
    %916 = vmatprep.subr.mxu0 0.0
    %917 = vmatpush1.msra.mxu0 0.0
    %918 = vmatprep.subr.mxu0 0.0
    %919 = vmatpush1.msra.mxu0 0.0
    %920 = vmatprep.subr.mxu0 0.0
    %921 = vmatpush1.msra.mxu0 0.0
    %922 = vmatprep.subr.mxu0 0.0
    %923 = vmatpush1.msra.mxu0 0.0
    %924 = vmatprep.subr.mxu0 0.0
    %925 = vmatpush1.msra.mxu0 0.0
    %926 = vmatprep.subr.mxu0 0.0
    %927 = vmatpush1.msra.mxu0 0.0
    %928 = vmatprep.subr.mxu0 0.0
    %929 = vmatpush1.msra.mxu0 0.0
    %930 = vmatprep.subr.mxu0 0.0
    %931 = vmatpush1.msra.mxu0 0.0
    %932 = vmatprep.subr.mxu0 0.0
    %933 = vmatpush1.msra.mxu0 0.0
    %934 = vmatprep.subr.mxu0 0.0
    %935 = vmatpush1.msra.mxu0 0.0
    %936 = vmatprep.subr.mxu0 0.0
    %937 = vmatpush1.msra.mxu0 0.0
    %938 = vmatprep.subr.mxu0 0.0
    %939 = vmatpush1.msra.mxu0 0.0
    %940 = vmatprep.subr.mxu0 0.0
    %941 = vmatpush1.msra.mxu0 0.0
    %942 = vmatprep.subr.mxu0 0.0
    %943 = vmatpush1.msra.mxu0 0.0
    %944 = vmatprep.subr.mxu0 0.0
    %945 = vmatpush1.msra.mxu0 0.0
    %946 = vmatprep.subr.mxu0 0.0
    %947 = vmatpush1.msra.mxu0 0.0
    %948 = vmatprep.subr.mxu0 0.0
    %949 = vmatpush1.msra.mxu0 0.0
    %950 = vmatprep.subr.mxu0 0.0
    %951 = vmatpush1.msra.mxu0 0.0
    %952 = vmatprep.subr.mxu0 0.0
    %953 = vmatpush1.msra.mxu0 0.0
    %954 = vmatprep.subr.mxu0 0.0
    %955 = vmatpush1.msra.mxu0 0.0
    %956 = vmatprep.subr.mxu0 0.0
    %957 = vmatpush1.msra.mxu0 0.0
    %958 = vmatprep.subr.mxu0 0.0
    %959 = vmatpush1.msra.mxu0 0.0
    %960 = vmatprep.subr.mxu0 0.0
    %961 = vmatpush1.msra.mxu0 0.0
    %962 = vmatprep.subr.mxu0 0.0
    %963 = vmatpush1.msra.mxu0 0.0
    %964 = vmatprep.subr.mxu0 0.0
    %965 = vmatpush1.msra.mxu0 0.0
    %966 = vmatprep.subr.mxu0 0.0
    %967 = vmatpush1.msra.mxu0 0.0
    %968 = vmatprep.subr.mxu0 0.0
    %969 = vmatpush1.msra.mxu0 0.0
    %970 = vmatprep.subr.mxu0 0.0
    %971 = vmatpush1.msra.mxu0 0.0
    %972 = vmatprep.subr.mxu0 0.0
    %973 = vmatpush1.msra.mxu0 0.0
    %974 = vmatprep.mubr.f32.mxu0 0.0
    %975 = vmatmul.mubr.f32.gmra.mrb[0].mxu0 %v908
    %v976 = vpop.f32.mrb[0].mxu0
    %v977 = vadd.f32 0.0, %v976
    %v978 = vpop.f32.mrb[0].mxu0
    %979 = vdwg.mxu0
    %v980 = vadd.f32 %v904, %v977
    %v981 = vxor.u32 %v980, 2147483648
    %v982 = vmul.f32 %v981, 1.442695
    %v983 = vpow.pop %v982
    %v984 = vadd.f32 %v983, 1.0
    %v985 = vrcp.pop %v984
    %v986 = vmul.f32 1.0, %v985
    %v987 = vtanh.pop %v980
    %v988 = vmul.f32 %v986, %v897
    %990 = vrot.lane.b32.xlu0 %v987, 80
    %v991 = vpop.permute.xlu0 %990
    %v993 = vmul.f32 %v986, %v991
    %995 = vrot.lane.b32.xlu0 %v993, 16
    %v996 = vpop.permute.xlu0 %995
    %v998 = vadd.f32 %v988, %v996
    %v999 = vtanh.pop %v998
    %1001 = vrot.lane.b32.xlu0 %v999, 16
    %v1002 = vpop.permute.xlu0 %1001
    %v1004 = vmul.f32 %v986, %v1002
    %1006 = vrot.lane.b32.xlu0 %v398, 112
    %v1007 = vpop.permute.xlu0 %1006
    %1009 = vrot.lane.b32.xlu0 %v600, 16
    %v1010 = vpop.permute.xlu0 %1009
    %1012 = vrot.lane.b32.xlu0 %v701, 32
    %v1013 = vpop.permute.xlu0 %1012
    %1015 = vrot.lane.b32.xlu0 %v802, 48
    %v1016 = vpop.permute.xlu0 %1015
    %1018 = vrot.lane.b32.xlu0 %v903, 64
    %v1019 = vpop.permute.xlu0 %1018
    %1022 = vrot.lane.b32.xlu0 %v1004, 80
    %v1023 = vpop.permute.xlu0 %1022
    %v1025 = vsel %vm199, %v301, %v1007
    %v1026 = vsel %vm57, %v1025, %v499
    %vm1027 = vcmask 392192
    %v1028 = vsel %vm1027, %v1026, %v1010
    %v1029 = vsel %vm187, %v1028, %v1013
    %vm1030 = vcmask 654336
    %v1031 = vsel %vm1030, %v1029, %v1016
    %vm1032 = vcmask 785408
    %v1033 = vsel %vm1032, %v1031, %v1019
    %vm1034 = vcmask 916480
    %v1035 = vsel %vm1034, %v1033, %v1023
    %v1036 = vld [vmem:[#allocation3] sm:$0xff]
    %v1037 = vld [vmem:[#allocation3 + $0x8] sm:$0xff]
    %v1038 = vld [vmem:[#allocation3 + $0x10] sm:$0xff]
    %v1039 = vld [vmem:[#allocation3 + $0x18] sm:$0xff]
    %v1040 = vld [vmem:[#allocation3 + $0x20] sm:$0xff]
    %v1041 = vld [vmem:[#allocation3 + $0x28] sm:$0xff]
    %v1042 = vld [vmem:[#allocation3 + $0x30] sm:$0xff]
    %v1043 = vld [vmem:[#allocation3 + $0x38] sm:$0xff]
    %v1044 = vld [vmem:[#allocation3 + $0x40] sm:$0xff]
    %v1045 = vld [vmem:[#allocation3 + $0x48] sm:$0xff]
    %v1046 = vld [vmem:[#allocation3 + $0x50] sm:$0xff]
    %v1047 = vld [vmem:[#allocation3 + $0x58] sm:$0xff]
    %v1048 = vld [vmem:[#allocation3 + $0x60] sm:$0xff]
    %v1049 = vld [vmem:[#allocation3 + $0x68] sm:$0xff]
    %v1050 = vld [vmem:[#allocation3 + $0x70] sm:$0xff]
    %v1051 = vld [vmem:[#allocation3 + $0x78] sm:$0xff]
    %v1052 = vld [vmem:[%s5] sm:$0x1]
    %v1054 = vlaneseq
    %v1055 = vshrl.u32 %v1054, 7
    %v1056 = vsub.s32 0, %v1055
    %v1057 = vrot.slane %v1052, %v1056
    %1059 = vmatprep.subr.mxu0 0.0
    %1060 = vmatpush1.msra.mxu0 %v1036
    %1061 = vmatprep.subr.mxu0 0.0
    %1062 = vmatpush1.msra.mxu0 %v1037
    %1063 = vmatprep.subr.mxu0 0.0
    %1064 = vmatpush1.msra.mxu0 %v1038
    %1065 = vmatprep.subr.mxu0 0.0
    %1066 = vmatpush1.msra.mxu0 %v1039
    %1067 = vmatprep.subr.mxu0 0.0
    %1068 = vmatpush1.msra.mxu0 %v1040
    %1069 = vmatprep.subr.mxu0 0.0
    %1070 = vmatpush1.msra.mxu0 %v1041
    %1071 = vmatprep.subr.mxu0 0.0
    %1072 = vmatpush1.msra.mxu0 %v1042
    %1073 = vmatprep.subr.mxu0 0.0
    %1074 = vmatpush1.msra.mxu0 %v1043
    %1075 = vmatprep.subr.mxu0 0.0
    %1076 = vmatpush1.msra.mxu0 %v1044
    %1077 = vmatprep.subr.mxu0 0.0
    %1078 = vmatpush1.msra.mxu0 %v1045
    %1079 = vmatprep.subr.mxu0 0.0
    %1080 = vmatpush1.msra.mxu0 %v1046
    %1081 = vmatprep.subr.mxu0 0.0
    %1082 = vmatpush1.msra.mxu0 %v1047
    %1083 = vmatprep.subr.mxu0 0.0
    %1084 = vmatpush1.msra.mxu0 %v1048
    %1085 = vmatprep.subr.mxu0 0.0
    %1086 = vmatpush1.msra.mxu0 %v1049
    %1087 = vmatprep.subr.mxu0 0.0
    %1088 = vmatpush1.msra.mxu0 %v1050
    %1089 = vmatprep.subr.mxu0 0.0
    %1090 = vmatpush1.msra.mxu0 %v1051
    %1091 = vmatprep.subr.mxu0 0.0
    %1092 = vmatpush1.msra.mxu0 0.0
    %1093 = vmatprep.subr.mxu0 0.0
    %1094 = vmatpush1.msra.mxu0 0.0
    %1095 = vmatprep.subr.mxu0 0.0
    %1096 = vmatpush1.msra.mxu0 0.0
    %1097 = vmatprep.subr.mxu0 0.0
    %1098 = vmatpush1.msra.mxu0 0.0
    %1099 = vmatprep.subr.mxu0 0.0
    %1100 = vmatpush1.msra.mxu0 0.0
    %1101 = vmatprep.subr.mxu0 0.0
    %1102 = vmatpush1.msra.mxu0 0.0
    %1103 = vmatprep.subr.mxu0 0.0
    %1104 = vmatpush1.msra.mxu0 0.0
    %1105 = vmatprep.subr.mxu0 0.0
    %1106 = vmatpush1.msra.mxu0 0.0
    %1107 = vmatprep.subr.mxu0 0.0
    %1108 = vmatpush1.msra.mxu0 0.0
    %1109 = vmatprep.subr.mxu0 0.0
    %1110 = vmatpush1.msra.mxu0 0.0
    %1111 = vmatprep.subr.mxu0 0.0
    %1112 = vmatpush1.msra.mxu0 0.0
    %1113 = vmatprep.subr.mxu0 0.0
    %1114 = vmatpush1.msra.mxu0 0.0
    %1115 = vmatprep.subr.mxu0 0.0
    %1116 = vmatpush1.msra.mxu0 0.0
    %1117 = vmatprep.subr.mxu0 0.0
    %1118 = vmatpush1.msra.mxu0 0.0
    %1119 = vmatprep.subr.mxu0 0.0
    %1120 = vmatpush1.msra.mxu0 0.0
    %1121 = vmatprep.subr.mxu0 0.0
    %1122 = vmatpush1.msra.mxu0 0.0
    %1123 = vmatprep.mubr.f32.mxu0 0.0
    %1124 = vmatmul.mubr.f32.gmra.mrb[0].mxu0 %v1035
    %v1125 = vpop.f32.mrb[0].mxu0
    %v1126 = vadd.f32 %v1057, %v1125
    %v1127 = vpop.f32.mrb[0].mxu0
    %1128 = vdwg.mxu0
    %1129 = vst [vmem:[#allocation6] sm:$0xff] %v1126
    // Predicated region
    $region30: #{tpu_custom_call.1} parent=1 // pred_check
      _
    $region31: #{tpu_custom_call.1} parent=1 // pred_check_branch
      %1131 = sbr.rel (0) target = $region33
    $region32: #{tpu_custom_call.1} parent=1 // pred_region
      %s1133 = ssub.s32 128, 128
      %1134 = vsyncadd [#allocation5], %s1133
      %s1136 = sshll.u32 [#allocation6], 4
      %s1137 = int_to_ptr.vmem [resolvable:$true] %s1136
      %1139 = dma.vmem_to_hbm [thread:$0]  %s1137, 128, %s6, [#allocation5]
    $region33: #{tpu_custom_call.1} parent=1 // pred_fallthru
      _
    // Predicated region
    $region34: #{tpu_custom_call.1} parent=1 // pred_check
      _
    $region35: #{tpu_custom_call.1} parent=1 // pred_check_branch
      %1141 = sbr.rel (0) target = $region37
    $region36: #{tpu_custom_call.1} parent=1 // pred_region
      %1142 = dma.done [#allocation5], 128
    $region37: #{tpu_custom_call.1} parent=1 // pred_fallthru
      _
    %1143 = vsyncpa [#allocation4], 1
    %1144 = vsyncpa [#allocation5], 1

</llo_original>
